<compile_context>
chip_gen: v7x
topology: tpu7x:2x2x1
jax: 0.10.0
libtpu: 0.0.40
codegen_flags: <defaults>
</compile_context>

<pallas_src>
import math
import functools

import jax
import jax.numpy as jnp
from jax.experimental import pallas as pl
from jax.experimental.pallas import tpu as pltpu

F32 = jnp.float32
BF16 = jnp.bfloat16
VMEM_LIMIT = 48 * 1024 * 1024
CONV_VMEM_BUDGET = 40 * 1024 * 1024


def _round_up(x, m):
    return ((x + m - 1) // m) * m


def _pick_tile(n, cap=768):
    """Largest 128-multiple divisor of n not exceeding cap (n is 128-aligned)."""
    for c in range(min(cap, n), 127, -128):
        if n % c == 0:
            return c
    return 128


def _divisor_tiles(n, cap=640):
    tiles = [c for c in range(min(cap, n), 127, -128) if n % c == 0]
    return tiles if tiles else [min(n, 128)]


# ----------------------------------------------------------------------------
# Pallas kernel: tiled matmul, bf16 inputs, f32 accumulator, fused epilogue
# ----------------------------------------------------------------------------
@functools.lru_cache(maxsize=None)
def _matmul_fn(Mp, Kp, Np, tm, tk, tn, act, has_bias, has_res):
    nk = Kp // tk

    def kernel(*refs):
        a_ref, b_ref = refs[0], refs[1]
        idx = 2
        bias_ref = refs[idx] if has_bias else None
        idx += int(has_bias)
        res_ref = refs[idx] if has_res else None
        idx += int(has_res)
        o_ref, acc_ref = refs[idx], refs[idx + 1]

        @pl.when(pl.program_id(2) == 0)
        def _init():
            acc_ref[...] = jnp.zeros_like(acc_ref)

        acc_ref[...] += jnp.dot(a_ref[...], b_ref[...],
                                preferred_element_type=jnp.float32)

        @pl.when(pl.program_id(2) == nk - 1)
        def _done():
            y = acc_ref[...]
            if has_bias:
                y = y + bias_ref[...]
            if act == "silu":
                y = y * jax.nn.sigmoid(y)
            if has_res:
                y = y + res_ref[...].astype(jnp.float32)
            o_ref[...] = y.astype(o_ref.dtype)

    in_specs = [pl.BlockSpec((tm, tk), lambda i, j, k: (i, k)),
                pl.BlockSpec((tk, tn), lambda i, j, k: (k, j))]
    if has_bias:
        in_specs.append(pl.BlockSpec((1, tn), lambda i, j, k: (0, j)))
    if has_res:
        in_specs.append(pl.BlockSpec((tm, tn), lambda i, j, k: (i, j)))

    f = pl.pallas_call(
        kernel,
        out_shape=jax.ShapeDtypeStruct((Mp, Np), BF16),
        grid_spec=pltpu.PrefetchScalarGridSpec(
            num_scalar_prefetch=0,
            grid=(Mp // tm, Np // tn, nk),
            in_specs=in_specs,
            out_specs=pl.BlockSpec((tm, tn), lambda i, j, k: (i, j)),
            scratch_shapes=[pltpu.VMEM((tm, tn), jnp.float32)]),
        compiler_params=pltpu.CompilerParams(
            dimension_semantics=("parallel", "parallel", "arbitrary"),
            vmem_limit_bytes=VMEM_LIMIT))
    return jax.jit(f)


def matmul(a, lin, residual=None, act="none"):
    """a:(M,K) @ lin["w"] (+bias) (+act) (+residual). Weights are pre-padded bf16."""
    M, K = a.shape
    Kp, Np = lin["w"].shape
    N = lin["nout"]
    tk = _pick_tile(Kp)
    tn = _pick_tile(Np)
    tm = min(_round_up(M, 8), 1024)
    Mp = _round_up(M, tm)
    ap = a.astype(BF16)
    if (Mp, Kp) != (M, K):
        ap = jnp.pad(ap, ((0, Mp - M), (0, Kp - K)))
    args = [ap, lin["w"]]
    has_bias = lin["b"] is not None
    if has_bias:
        args.append(lin["b"])
    has_res = residual is not None
    if has_res:
        rp = residual.astype(BF16)
        if (Mp, Np) != rp.shape:
            rp = jnp.pad(rp, ((0, Mp - M), (0, Np - N)))
        args.append(rp)
    out = _matmul_fn(Mp, Kp, Np, tm, tk, tn, act, has_bias, has_res)(*args)
    if (Mp, Np) != (M, N):
        out = out[:M, :N]
    return out


# ----------------------------------------------------------------------------
# Pallas kernel: fused GEGLU  ( out = (x@Wa + ba) * gelu(x@Wg + bg) )
# ----------------------------------------------------------------------------
@functools.lru_cache(maxsize=None)
def _geglu_matmul_fn(Mp, Kp, Np, tm, tk, tn):
    nk = Kp // tk

    def kernel(a_ref, wa_ref, wg_ref, ba_ref, bg_ref, o_ref, acca_ref, accg_ref):
        @pl.when(pl.program_id(2) == 0)
        def _init():
            acca_ref[...] = jnp.zeros_like(acca_ref)
            accg_ref[...] = jnp.zeros_like(accg_ref)

        a = a_ref[...]
        acca_ref[...] += jnp.dot(a, wa_ref[...], preferred_element_type=jnp.float32)
        accg_ref[...] += jnp.dot(a, wg_ref[...], preferred_element_type=jnp.float32)

        @pl.when(pl.program_id(2) == nk - 1)
        def _done():
            val = acca_ref[...] + ba_ref[...]
            g = accg_ref[...] + bg_ref[...]
            # TODO(synk): PyTorch F.gelu defaults to the exact erf GELU; the
            # tanh approximation is used in-kernel here.
            gelu = 0.5 * g * (1.0 + jnp.tanh(0.7978845608028654 *
                                             (g + 0.044715 * g * g * g)))
            o_ref[...] = (val * gelu).astype(o_ref.dtype)

    f = pl.pallas_call(
        kernel,
        out_shape=jax.ShapeDtypeStruct((Mp, Np), BF16),
        grid_spec=pltpu.PrefetchScalarGridSpec(
            num_scalar_prefetch=0,
            grid=(Mp // tm, Np // tn, nk),
            in_specs=[pl.BlockSpec((tm, tk), lambda i, j, k: (i, k)),
                      pl.BlockSpec((tk, tn), lambda i, j, k: (k, j)),
                      pl.BlockSpec((tk, tn), lambda i, j, k: (k, j)),
                      pl.BlockSpec((1, tn), lambda i, j, k: (0, j)),
                      pl.BlockSpec((1, tn), lambda i, j, k: (0, j))],
            out_specs=pl.BlockSpec((tm, tn), lambda i, j, k: (i, j)),
            scratch_shapes=[pltpu.VMEM((tm, tn), jnp.float32),
                            pltpu.VMEM((tm, tn), jnp.float32)]),
        compiler_params=pltpu.CompilerParams(
            dimension_semantics=("parallel", "parallel", "arbitrary"),
            vmem_limit_bytes=VMEM_LIMIT))
    return jax.jit(f)


def geglu_matmul(a, lin_a, lin_g):
    M, K = a.shape
    Kp, Np = lin_a["w"].shape
    N = lin_a["nout"]
    tk = _pick_tile(Kp)
    tn = _pick_tile(Np)
    tm = min(_round_up(M, 8), 1024)
    Mp = _round_up(M, tm)
    ap = a.astype(BF16)
    if (Mp, Kp) != (M, K):
        ap = jnp.pad(ap, ((0, Mp - M), (0, Kp - K)))
    out = _geglu_matmul_fn(Mp, Kp, Np, tm, tk, tn)(
        ap, lin_a["w"], lin_g["w"], lin_a["b"], lin_g["b"])
    if (Mp, Np) != (M, N):
        out = out[:M, :N]
    return out


# ----------------------------------------------------------------------------
# Pallas kernel: 3x3 stride-1 conv via in-kernel tap accumulation (no im2col)
# ----------------------------------------------------------------------------
def _conv_tiles(Cin_p, Cout_p, M_out, R_in, has_res):
    """Largest (tcin, tcout) divisor tiles fitting the VMEM budget (prefer tcout)."""
    best, best_key = (128, 128), (-1, -1)
    for tci in _divisor_tiles(Cin_p):
        for tco in _divisor_tiles(Cout_p):
            est = (2 * R_in * tci * 2            # x double-buffered, bf16
                   + 2 * 9 * tci * tco * 2       # taps of weights, bf16
                   + 2 * M_out * tco * 2         # out, bf16
                   + (2 * M_out * tco * 2 if has_res else 0)
                   + M_out * tco * 4)            # f32 accumulator scratch
            if est <= CONV_VMEM_BUDGET and (tco, tci) > best_key:
                best, best_key = (tci, tco), (tco, tci)
    return best


@functools.lru_cache(maxsize=None)
def _conv3x3_fn(B, R_in, M_out, Wp_a, Cin_p, Cout_p, tcin, tcout, has_res):
    nci = Cin_p // tcin

    def kernel(*refs):
        x_ref, w_ref, b_ref = refs[0], refs[1], refs[2]
        idx = 3
        res_ref = refs[idx] if has_res else None
        idx += int(has_res)
        o_ref, acc_ref = refs[idx], refs[idx + 1]
        k = pl.program_id(2)

        @pl.when(k == 0)
        def _init():
            acc_ref[...] = jnp.zeros_like(acc_ref)

        # TODO(synk): the 6 kw!=0 taps start at non-8-aligned sublane offsets;
        # an XLU-roll based variant could offload the re-layout to the XLU.
        for kh in range(3):
            for kw in range(3):
                t = 3 * kh + kw
                off = kh * Wp_a + kw
                lhs = x_ref[0, pl.ds(off, M_out), :]
                acc_ref[...] += jnp.dot(lhs, w_ref[t],
                                        preferred_element_type=jnp.float32)

        @pl.when(k == nci - 1)
        def _done():
            y = acc_ref[...] + b_ref[...]
            if has_res:
                y = y + res_ref[0].astype(jnp.float32)
            o_ref[0] = y.astype(o_ref.dtype)

    in_specs = [pl.BlockSpec((1, R_in, tcin), lambda b, j, k: (b, 0, k)),
                pl.BlockSpec((9, tcin, tcout), lambda b, j, k: (0, k, j)),
                pl.BlockSpec((1, tcout), lambda b, j, k: (0, j))]
    if has_res:
        in_specs.append(pl.BlockSpec((1, M_out, tcout), lambda b, j, k: (b, 0, j)))

    f = pl.pallas_call(
        kernel,
        out_shape=jax.ShapeDtypeStruct((B, M_out, Cout_p), BF16),
        grid_spec=pltpu.PrefetchScalarGridSpec(
            num_scalar_prefetch=0,
            grid=(B, Cout_p // tcout, nci),
            in_specs=in_specs,
            out_specs=pl.BlockSpec((1, M_out, tcout), lambda b, j, k: (b, 0, j)),
            scratch_shapes=[pltpu.VMEM((M_out, tcout), jnp.float32)]),
        compiler_params=pltpu.CompilerParams(
            dimension_semantics=("parallel", "parallel", "arbitrary"),
            vmem_limit_bytes=VMEM_LIMIT))
    return jax.jit(f)


def conv3x3(x, cv, H, W, extra_bias=None, residual=None):
    """3x3 / stride-1 / pad-1 conv on (B, H*W, Cin); taps folded into K-reduce."""
    B, HW, Cin = x.shape
    Cin_p, Cout_p = cv["w"].shape[1], cv["w"].shape[2]
    Cout = cv["cout"]
    Hp = H + 2
    Wp_a = _round_up(W + 2, 8)       # sublane-aligned row stride
    M_out = H * Wp_a
    R_in = Hp * Wp_a + 8
    xi = jnp.pad(x.reshape(B, H, W, Cin).astype(BF16),
                 ((0, 0), (1, 1), (1, Wp_a - W - 1), (0, Cin_p - Cin)))
    xflat = jnp.pad(xi.reshape(B, Hp * Wp_a, Cin_p),
                    ((0, 0), (0, R_in - Hp * Wp_a), (0, 0)))
    bias = cv["b"]
    if extra_bias is not None:
        eb = extra_bias.astype(F32).reshape(1, -1)
        bias = bias + jnp.pad(eb, ((0, 0), (0, Cout_p - eb.shape[1])))
    has_res = residual is not None
    tcin, tcout = _conv_tiles(Cin_p, Cout_p, M_out, R_in, has_res)
    args = [xflat, cv["w"], bias]
    if has_res:
        rp = jnp.pad(residual.reshape(B, H, W, Cout).astype(BF16),
                     ((0, 0), (0, 0), (0, Wp_a - W), (0, Cout_p - Cout)))
        args.append(rp.reshape(B, M_out, Cout_p))
    y = _conv3x3_fn(B, R_in, M_out, Wp_a, Cin_p, Cout_p, tcin, tcout, has_res)(*args)
    return y.reshape(B, H, Wp_a, Cout_p)[:, :, :W, :Cout].reshape(B, H * W, Cout)


def conv3x3_s2(x, lin, H, W):
    # TODO(synk): the 3 stride-2 downsampling convs keep a bf16 im2col path;
    # stride-1 convs use the tap-accumulation Pallas kernel above.
    B, HW, Cin = x.shape
    Ho = (H + 2 - 3) // 2 + 1
    Wo = (W + 2 - 3) // 2 + 1
    xi = jnp.pad(x.reshape(B, H, W, Cin).astype(BF16),
                 ((0, 0), (1, 1), (1, 1), (0, 0)))
    cols = []
    for kh in range(3):
        for kw in range(3):
            cols.append(xi[:, kh:kh + 2 * Ho:2, kw:kw + 2 * Wo:2, :])
    patches = jnp.concatenate(cols, axis=-1).reshape(B * Ho * Wo, 9 * Cin)
    y = matmul(patches, lin)
    return y.reshape(B, Ho * Wo, lin["nout"]), Ho, Wo


# ----------------------------------------------------------------------------
# Pallas kernels: GroupNorm on (B, HW, C) — tiled two-phase reduction + apply
# ----------------------------------------------------------------------------
@functools.lru_cache(maxsize=None)
def _group_mats(C):
    G = 32
    cpg = C // G
    m = jnp.repeat(jnp.eye(G, dtype=F32), cpg, axis=0)        # (C, G) indicator
    return m, jnp.transpose(m)


def _hw_tile(HW):
    if HW <= 512:
        return HW
    for c in (512, 256, 128):
        if HW % c == 0:
            return c
    return HW


@functools.lru_cache(maxsize=None)
def _gn_stats_fn(B, HWp, C, thw, HW):
    nT = HWp // thw
    G = 32
    inv_n = 1.0 / float(HW * (C // G))

    def kernel(x_ref, m_ref, mt_ref, o_ref, s1, s2):
        t = pl.program_id(1)

        @pl.when(t == 0)
        def _init():
            s1[...] = jnp.zeros_like(s1)
            s2[...] = jnp.zeros_like(s2)

        x = x_ref[0].astype(jnp.float32)                      # (thw, C)
        s1[...] += jnp.sum(x, axis=0, keepdims=True)
        s2[...] += jnp.sum(x * x, axis=0, keepdims=True)

        @pl.when(t == nT - 1)
        def _done():
            gsum = jnp.dot(s1[...], m_ref[...], preferred_element_type=jnp.float32)
            gsq = jnp.dot(s2[...], m_ref[...], preferred_element_type=jnp.float32)
            gmean = gsum * inv_n
            gvar = gsq * inv_n - gmean * gmean
            grstd = jax.lax.rsqrt(gvar + 1e-5)
            mean_c = jnp.dot(gmean, mt_ref[...], preferred_element_type=jnp.float32)
            rstd_c = jnp.dot(grstd, mt_ref[...], preferred_element_type=jnp.float32)
            o_ref[0, 0:1, :] = mean_c
            o_ref[0, 1:2, :] = rstd_c

    f = pl.pallas_call(
        kernel,
        out_shape=jax.ShapeDtypeStruct((B, 2, C), F32),
        grid_spec=pltpu.PrefetchScalarGridSpec(
            num_scalar_prefetch=0,
            grid=(B, nT),
            in_specs=[pl.BlockSpec((1, thw, C), lambda b, t: (b, t, 0)),
                      pl.BlockSpec((C, G), lambda b, t: (0, 0)),
                      pl.BlockSpec((G, C), lambda b, t: (0, 0))],
            out_specs=pl.BlockSpec((1, 2, C), lambda b, t: (b, 0, 0)),
            scratch_shapes=[pltpu.VMEM((1, C), jnp.float32),
                            pltpu.VMEM((1, C), jnp.float32)]),
        compiler_params=pltpu.CompilerParams(
            dimension_semantics=("parallel", "arbitrary"),
            vmem_limit_bytes=VMEM_LIMIT))
    return jax.jit(f)


@functools.lru_cache(maxsize=None)
def _gn_apply_fn(B, HWp, C, thw, fuse_silu):
    def kernel(x_ref, st_ref, g_ref, b_ref, o_ref):
        x = x_ref[0].astype(jnp.float32)
        mean = st_ref[0, 0:1, :]
        rstd = st_ref[0, 1:2, :]
        y = (x - mean) * rstd * g_ref[...] + b_ref[...]
        if fuse_silu:
            y = y * jax.nn.sigmoid(y)
        o_ref[0] = y.astype(o_ref.dtype)

    f = pl.pallas_call(
        kernel,
        out_shape=jax.ShapeDtypeStruct((B, HWp, C), BF16),
        grid_spec=pltpu.PrefetchScalarGridSpec(
            num_scalar_prefetch=0,
            grid=(B, HWp // thw),
            in_specs=[pl.BlockSpec((1, thw, C), lambda b, t: (b, t, 0)),
                      pl.BlockSpec((1, 2, C), lambda b, t: (b, 0, 0)),
                      pl.BlockSpec((1, C), lambda b, t: (0, 0)),
                      pl.BlockSpec((1, C), lambda b, t: (0, 0))],
            out_specs=pl.BlockSpec((1, thw, C), lambda b, t: (b, t, 0))),
        compiler_params=pltpu.CompilerParams(
            dimension_semantics=("parallel", "parallel"),
            vmem_limit_bytes=VMEM_LIMIT))
    return jax.jit(f)


def group_norm(x, nrm, fuse_silu=False):
    B, HW, C = x.shape
    thw = _hw_tile(HW)
    HWp = _round_up(HW, thw)
    xb = x.astype(BF16)
    if HWp != HW:
        xb = jnp.pad(xb, ((0, 0), (0, HWp - HW), (0, 0)))
    m, mt = _group_mats(C)
    stats = _gn_stats_fn(B, HWp, C, thw, HW)(xb, m, mt)
    y = _gn_apply_fn(B, HWp, C, thw, bool(fuse_silu))(xb, stats, nrm["g"], nrm["b"])
    if HWp != HW:
        y = y[:, :HW, :]
    return y


# ----------------------------------------------------------------------------
# Pallas kernel: LayerNorm over channels, row-tiled
# ----------------------------------------------------------------------------
@functools.lru_cache(maxsize=None)
def _ln_fn(Rp, C, tm):
    def kernel(x_ref, g_ref, b_ref, o_ref):
        x = x_ref[...].astype(jnp.float32)
        mean = jnp.mean(x, axis=-1, keepdims=True)
        d = x - mean
        var = jnp.mean(d * d, axis=-1, keepdims=True)
        y = d * jax.lax.rsqrt(var + 1e-5) * g_ref[...] + b_ref[...]
        o_ref[...] = y.astype(o_ref.dtype)

    f = pl.pallas_call(
        kernel,
        out_shape=jax.ShapeDtypeStruct((Rp, C), BF16),
        grid_spec=pltpu.PrefetchScalarGridSpec(
            num_scalar_prefetch=0,
            grid=(Rp // tm,),
            in_specs=[pl.BlockSpec((tm, C), lambda i: (i, 0)),
                      pl.BlockSpec((1, C), lambda i: (0, 0)),
                      pl.BlockSpec((1, C), lambda i: (0, 0))],
            out_specs=pl.BlockSpec((tm, C), lambda i: (i, 0))),
        compiler_params=pltpu.CompilerParams(
            dimension_semantics=("parallel",),
            vmem_limit_bytes=VMEM_LIMIT))
    return jax.jit(f)


def layer_norm(x, nrm):
    B, S, C = x.shape
    R = B * S
    tm = min(_round_up(R, 8), 1024)
    Rp = _round_up(R, tm)
    xr = x.reshape(R, C).astype(BF16)
    if Rp != R:
        xr = jnp.pad(xr, ((0, Rp - R), (0, 0)))
    y = _ln_fn(Rp, C, tm)(xr, nrm["g"], nrm["b"])
    if Rp != R:
        y = y[:R]
    return y.reshape(B, S, C)


# ----------------------------------------------------------------------------
# Pallas kernel: flash attention (online softmax over KV tiles),
# head-major padded column layout (no head split / transpose glue).
# ----------------------------------------------------------------------------
@functools.lru_cache(maxsize=None)
def _flash_fn(B, nH, Sp, Lp, tq, tkv, Dp, L, q_off, k_off, v_off):
    nkv = Lp // tkv
    masked = (Lp != L)

    def kernel(q_ref, k_ref, v_ref, o_ref, m_sc, l_sc, acc_sc):
        j = pl.program_id(3)

        @pl.when(j == 0)
        def _init():
            m_sc[...] = jnp.full(m_sc.shape, -1e30, dtype=jnp.float32)
            l_sc[...] = jnp.zeros_like(l_sc)
            acc_sc[...] = jnp.zeros_like(acc_sc)

        q = q_ref[0]
        k = k_ref[0]
        # 1/sqrt(dh) already folded into the Q projection weights.
        s = jax.lax.dot_general(q, k, (((1,), (1,)), ((), ())),
                                preferred_element_type=jnp.float32)
        if masked:
            pos = j * tkv + jax.lax.broadcasted_iota(jnp.int32, (tq, tkv), 1)
            s = jnp.where(pos < L, s, -1e30)
        m_prev = m_sc[...]
        m_new = jnp.maximum(m_prev, jnp.max(s, axis=-1, keepdims=True))
        alpha = jnp.exp(m_prev - m_new)
        p = jnp.exp(s - m_new)
        l_sc[...] = alpha * l_sc[...] + jnp.sum(p, axis=-1, keepdims=True)
        acc_sc[...] = alpha * acc_sc[...] + jnp.dot(
            p.astype(v_ref.dtype), v_ref[0], preferred_element_type=jnp.float32)
        m_sc[...] = m_new

        @pl.when(j == nkv - 1)
        def _done():
            o_ref[0] = (acc_sc[...] / l_sc[...]).astype(o_ref.dtype)

    f = pl.pallas_call(
        kernel,
        out_shape=jax.ShapeDtypeStruct((B, Sp, nH * Dp), BF16),
        grid_spec=pltpu.PrefetchScalarGridSpec(
            num_scalar_prefetch=0,
            grid=(B, nH, Sp // tq, nkv),
            in_specs=[
                pl.BlockSpec((1, tq, Dp), lambda b, h, i, j: (b, i, q_off + h)),
                pl.BlockSpec((1, tkv, Dp), lambda b, h, i, j: (b, j, k_off + h)),
                pl.BlockSpec((1, tkv, Dp), lambda b, h, i, j: (b, j, v_off + h)),
            ],
            out_specs=pl.BlockSpec((1, tq, Dp), lambda b, h, i, j: (b, i, h)),
            scratch_shapes=[pltpu.VMEM((tq, 1), jnp.float32),
                            pltpu.VMEM((tq, 1), jnp.float32),
                            pltpu.VMEM((tq, Dp), jnp.float32)]),
        compiler_params=pltpu.CompilerParams(
            dimension_semantics=("parallel", "parallel", "parallel", "arbitrary"),
            vmem_limit_bytes=VMEM_LIMIT))
    return jax.jit(f)


def sdpa(q3, kv3, n_heads, Dp, q_off, k_off, v_off):
    """q3:(B,S,*), kv3:(B,L,*); head h lives in Dp-wide column block (off+h)."""
    # TODO(synk): heads with dh=40/80 are still padded to a 128-lane slab
    # (extra MXU FLOPs, mostly relevant on v5e); head-packing not implemented.
    B, S, _ = q3.shape
    L = kv3.shape[1]
    tq = min(_round_up(S, 8), 512)
    Sp = _round_up(S, tq)
    tkv = min(_round_up(L, 8), 512)
    Lp = _round_up(L, tkv)
    if Sp != S:
        q3 = jnp.pad(q3, ((0, 0), (0, Sp - S), (0, 0)))
    if Lp != L:
        kv3 = jnp.pad(kv3, ((0, 0), (0, Lp - L), (0, 0)))
    o = _flash_fn(B, n_heads, Sp, Lp, tq, tkv, Dp, L,
                  q_off, k_off, v_off)(q3, kv3, kv3)
    if Sp != S:
        o = o[:, :S, :]
    return o


# ----------------------------------------------------------------------------
# UNet blocks
# ----------------------------------------------------------------------------
def residual_block(x, H, W, time_silu, p):
    B, HW, Cin = x.shape
    h = group_norm(x, p["gn1"], fuse_silu=True)
    t = matmul(time_silu, p["lt"])                        # linear_time(silu(time))
    h = conv3x3(h, p["cf"], H, W, extra_bias=t)           # time add folded into bias
    h = group_norm(h, p["gn2"], fuse_silu=True)
    if "rl" in p:
        res = matmul(x.reshape(B * HW, Cin), p["rl"]).reshape(B, HW, -1)
    else:
        res = x
    return conv3x3(h, p["cm"], H, W, residual=res)


def attention_block(x, H, W, ctx, p):
    B, HW, C = x.shape
    nH = p["n_heads"]
    Dp = p["dp"]
    HD = nH * Dp
    long_res = x.reshape(B * HW, C)
    h = group_norm(x, p["gn"])
    h = matmul(h.reshape(B * HW, C), p["ci"])             # 1x1 conv_input
    short = h
    ln = layer_norm(h.reshape(B, HW, C), p["ln1"]).reshape(B * HW, C)
    qkv = matmul(ln, p["att1"]["in"]).reshape(B, HW, 3 * HD)
    o = sdpa(qkv, qkv, nH, Dp, 0, nH, 2 * nH)
    h = matmul(o.reshape(B * HW, HD), p["att1"]["out"], residual=short)
    short = h
    ln = layer_norm(h.reshape(B, HW, C), p["ln2"]).reshape(B * HW, C)
    Bc, L, Dc = ctx.shape
    q = matmul(ln, p["att2"]["q"]).reshape(B, HW, HD)
    kv = matmul(ctx.reshape(Bc * L, Dc), p["att2"]["kv"]).reshape(Bc, L, 2 * HD)
    o = sdpa(q, kv, nH, Dp, 0, 0, nH)
    h = matmul(o.reshape(B * HW, HD), p["att2"]["out"], residual=short)
    short = h
    ln = layer_norm(h.reshape(B, HW, C), p["ln3"]).reshape(B * HW, C)
    hg = geglu_matmul(ln, p["g1a"], p["g1g"])
    h = matmul(hg, p["g2"], residual=short)
    h = matmul(h, p["co"], residual=long_res)             # 1x1 conv_output + long res
    return h.reshape(B, HW, C)


def apply_layer(layer, x, H, W, ctx, time_silu):
    t = layer["type"]
    if t == "conv_s1":
        return conv3x3(x, layer["cv"], H, W), H, W
    if t == "conv_s2":
        return conv3x3_s2(x, layer["lin"], H, W)
    if t == "up":
        # TODO(synk): nearest-2x upsample is built with a single broadcast and
        # consumed by conv3x3's padded copy; an in-kernel gather would avoid
        # the materialization entirely.
        B, HW, C = x.shape
        xi = x.reshape(B, H, W, C)
        xi = jnp.broadcast_to(xi[:, :, None, :, None, :],
                              (B, H, 2, W, 2, C)).reshape(B, 2 * H, 2 * W, C)
        H, W = 2 * H, 2 * W
        return conv3x3(xi.reshape(B, H * W, C), layer["cv"], H, W), H, W
    if t == "res":
        return residual_block(x, H, W, time_silu, layer), H, W
    if t == "attn":
        return attention_block(x, H, W, ctx, layer), H, W
    raise ValueError(t)


def run_stage(stage, x, H, W, ctx, time_silu):
    for layer in stage:
        x, H, W = apply_layer(layer, x, H, W, ctx, time_silu)
    return x, H, W


# ----------------------------------------------------------------------------
# Parameter construction (deterministic, synthetic; pre-padded, bf16 weights)
# ----------------------------------------------------------------------------
def make_params(seed=1):
    key = [jax.random.PRNGKey(seed)]

    def nk():
        key[0], k = jax.random.split(key[0])
        return k

    def norm(c):
        return {"g": jnp.ones((1, c), F32), "b": jnp.zeros((1, c), F32)}

    def linear(din, dout, bias=True):
        Kp, Np = _round_up(din, 128), _round_up(dout, 128)
        w = jax.random.normal(nk(), (din, dout), F32) * (1.0 / math.sqrt(din))
        return {"w": jnp.pad(w, ((0, Kp - din), (0, Np - dout))).astype(BF16),
                "b": jnp.zeros((1, Np), F32) if bias else None,
                "kin": din, "nout": dout}

    def head_major_cols(w, nH, dh, Dp):
        din = w.shape[0]
        t = w.reshape(din, nH, dh)
        t = jnp.pad(t, ((0, 0), (0, 0), (0, Dp - dh)))
        return t.reshape(din, nH * Dp)

    def attn_proj(din, nH, dh, Dp, n_seg, scale_first=1.0):
        """n_seg stacked (din -> nH*Dp) projections, head-major padded columns."""
        Kp = _round_up(din, 128)
        segs = []
        for s in range(n_seg):
            w = jax.random.normal(nk(), (din, nH * dh), F32) * (1.0 / math.sqrt(din))
            if s == 0:
                w = w * scale_first
            segs.append(head_major_cols(w, nH, dh, Dp))
        whm = jnp.concatenate(segs, axis=1)
        Np = n_seg * nH * Dp
        return {"w": jnp.pad(whm, ((0, Kp - din), (0, 0))).astype(BF16),
                "b": None, "kin": din, "nout": Np}

    def attn_out_linear(nH, dh, Dp, dout):
        din = nH * dh
        w = jax.random.normal(nk(), (din, dout), F32) * (1.0 / math.sqrt(din))
        t = jnp.pad(w.reshape(nH, dh, dout), ((0, 0), (0, Dp - dh), (0, 0)))
        whm = t.reshape(nH * Dp, dout)
        Np = _round_up(dout, 128)
        return {"w": jnp.pad(whm, ((0, 0), (0, Np - dout))).astype(BF16),
                "b": jnp.zeros((1, Np), F32), "kin": nH * Dp, "nout": dout}

    def conv_tap(cin, cout):
        Cp, Op = _round_up(cin, 128), _round_up(cout, 128)
        w = jax.random.normal(nk(), (9, cin, cout), F32) * (1.0 / math.sqrt(9 * cin))
        return {"w": jnp.pad(w, ((0, 0), (0, Cp - cin), (0, Op - cout))).astype(BF16),
                "b": jnp.zeros((1, Op), F32), "cin": cin, "cout": cout}

    def conv_flat(cin, cout):
        din = 9 * cin
        Kp, Np = _round_up(din, 128), _round_up(cout, 128)
        w = jax.random.normal(nk(), (din, cout), F32) * (1.0 / math.sqrt(din))
        return {"w": jnp.pad(w, ((0, Kp - din), (0, Np - cout))).astype(BF16),
                "b": jnp.zeros((1, Np), F32), "kin": din, "nout": cout}

    def conv_s1(cin, cout):
        return {"type": "conv_s1", "cv": conv_tap(cin, cout)}

    def down(c):
        return {"type": "conv_s2", "lin": conv_flat(c, c)}

    def up(c):
        return {"type": "up", "cv": conv_tap(c, c)}

    def res(cin, cout):
        d = {"type": "res", "gn1": norm(cin), "cf": conv_tap(cin, cout),
             "lt": linear(1280, cout), "gn2": norm(cout), "cm": conv_tap(cout, cout)}
        if cin != cout:
            d["rl"] = linear(cin, cout)
        return d

    def attn(n_head, n_embd, d_ctx=768):
        C = n_head * n_embd
        dh = n_embd
        Dp = _round_up(dh, 128)
        scale = 1.0 / math.sqrt(dh)
        return {"type": "attn", "n_heads": n_head, "dp": Dp,
                "gn": norm(C), "ci": linear(C, C), "ln1": norm(C),
                "att1": {"in": attn_proj(C, n_head, dh, Dp, 3, scale_first=scale),
                         "out": attn_out_linear(n_head, dh, Dp, C)},
                "ln2": norm(C),
                "att2": {"q": attn_proj(C, n_head, dh, Dp, 1, scale_first=scale),
                         "kv": attn_proj(d_ctx, n_head, dh, Dp, 2),
                         "out": attn_out_linear(n_head, dh, Dp, C)},
                "ln3": norm(C),
                "g1a": linear(C, 4 * C), "g1g": linear(C, 4 * C),
                "g2": linear(4 * C, C), "co": linear(C, C)}

    params = {}
    params["te"] = {"l1": linear(320, 1280), "l2": linear(1280, 1280)}
    params["enc"] = [
        [conv_s1(4, 320)],
        [res(320, 320), attn(8, 40)],
        [res(320, 320), attn(8, 40)],
        [down(320)],
        [res(320, 640), attn(8, 80)],
        [res(640, 640), attn(8, 80)],
        [down(640)],
        [res(640, 1280), attn(8, 160)],
        [res(1280, 1280), attn(8, 160)],
        [down(1280)],
        [res(1280, 1280)],
        [res(1280, 1280)],
    ]
    params["bottleneck"] = [res(1280, 1280), attn(8, 160), res(1280, 1280)]
    params["dec"] = [
        [res(2560, 1280)],
        [res(2560, 1280)],
        [res(2560, 1280), up(1280)],
        [res(2560, 1280), attn(8, 160)],
        [res(2560, 1280), attn(8, 160)],
        [res(1920, 1280), attn(8, 160), up(1280)],
        [res(1920, 640), attn(8, 80)],
        [res(1280, 640), attn(8, 80)],
        [res(960, 640), attn(8, 80), up(640)],
        [res(960, 320), attn(8, 40)],
        [res(640, 320), attn(8, 40)],
        [res(640, 320), attn(8, 40)],
    ]
    params["final"] = {"gn": norm(320), "conv": conv_tap(320, 4)}
    return params


# ----------------------------------------------------------------------------
# Diffusion forward
# ----------------------------------------------------------------------------
def diffusion_forward(params, latent_nchw, context, time):
    # TimeEmbedding: linear -> silu -> linear; the silu(time) consumed by every
    # residual block is fused into the second matmul's epilogue.
    t1 = matmul(time.astype(F32), params["te"]["l1"], act="silu")
    time_silu = matmul(t1, params["te"]["l2"], act="silu")

    B, Cin, H, W = latent_nchw.shape
    x = jnp.transpose(latent_nchw, (0, 2, 3, 1)).reshape(B, H * W, Cin).astype(BF16)

    skips = []
    for stage in params["enc"]:
        x, H, W = run_stage(stage, x, H, W, context, time_silu)
        skips.append(x)
    x, H, W = run_stage(params["bottleneck"], x, H, W, context, time_silu)
    for stage in params["dec"]:
        # TODO(synk): skip concat is a bf16 XLA glue copy; folding the two
        # channel ranges into the following kernels' K reduction would remove it.
        x = jnp.concatenate([x, skips.pop()], axis=-1)
        x, H, W = run_stage(stage, x, H, W, context, time_silu)

    # UNET_OutputLayer: groupnorm -> silu -> conv3x3 (320 -> 4)
    x = group_norm(x, params["final"]["gn"], fuse_silu=True)
    x = conv3x3(x, params["final"]["conv"], H, W)
    return jnp.transpose(x.reshape(B, H, W, 4).astype(F32), (0, 3, 1, 2))


# ----------------------------------------------------------------------------
if __name__ == "__main__":
    key = jax.random.PRNGKey(0)
    k1, k2, k3 = jax.random.split(key, 3)
    latent = jax.random.normal(k1, (1, 4, 8, 8), F32)     # NCHW, like PyTorch
    context = jax.random.normal(k2, (1, 8, 768), F32)     # (B, seq, d_context)
    time = jax.random.normal(k3, (1, 320), F32)           # (1, d_embd)

    params = make_params(seed=1)
    out = diffusion_forward(params, latent, context, time)
    out = jax.block_until_ready(out)
    assert out.shape == (1, 4, 8, 8)
    print("KERNEL_OK")
</pallas_src>

<mosaic_0001>
module attributes {stable_mosaic.version = 11 : i64} {
  func.func @kernel(%arg0: i32, %arg1: i32, %arg2: i32, %arg3: memref<8x384xbf16, #tpu.memory_space<vmem>>, %arg4: memref<384x640xbf16, #tpu.memory_space<vmem>>, %arg5: memref<1x640xf32, #tpu.memory_space<vmem>>, %arg6: memref<8x640xbf16, #tpu.memory_space<vmem>>, %arg7: memref<8x640xf32, #tpu.memory_space<vmem>>) attributes {dimension_semantics = [#tpu.dimension_semantics<parallel>, #tpu.dimension_semantics<parallel>, #tpu.dimension_semantics<arbitrary>], iteration_bounds = array<i64: 1, 2, 1>, scalar_prefetch = 0 : i64, scratch_operands = 1 : i64, tpu.core_type = #tpu.core_type<tc>, window_params = [{transform_indices = @transform_0, window_bounds = array<i64: 8, 384>}, {transform_indices = @transform_1, window_bounds = array<i64: 384, 640>}, {transform_indices = @transform_2, window_bounds = array<i64: 1, 640>}, {transform_indices = @transform_3, window_bounds = array<i64: 8, 640>}]} {
    %c0_i32 = arith.constant 0 : i32
    %0 = arith.cmpi eq, %arg2, %c0_i32 : i32
    %1 = arith.extui %0 : i1 to i32
    %c0_i32_0 = arith.constant 0 : i32
    %2 = arith.cmpi ne, %1, %c0_i32_0 : i32
    scf.if %2 {
      %cst_10 = arith.constant 0.000000e+00 : f32
      %12 = vector.broadcast %cst_10 : f32 to vector<8x640xf32>
      %c0_11 = arith.constant 0 : index
      %c0_12 = arith.constant 0 : index
      %13 = vector.load %arg7[%c0_11, %c0_12] : memref<8x640xf32, #tpu.memory_space<vmem>>, vector<8x640xf32>
      tpu.vector_store %arg7[%c0_11, %c0_12], %12 {strides = array<i32>} : memref<8x640xf32, #tpu.memory_space<vmem>>, vector<8x640xf32>,
    } else {
    }
    %c0 = arith.constant 0 : index
    %c0_1 = arith.constant 0 : index
    %3 = vector.load %arg7[%c0, %c0_1] : memref<8x640xf32, #tpu.memory_space<vmem>>, vector<8x640xf32>
    %c0_2 = arith.constant 0 : index
    %c0_3 = arith.constant 0 : index
    %4 = vector.load %arg3[%c0_2, %c0_3] : memref<8x384xbf16, #tpu.memory_space<vmem>>, vector<8x384xbf16>
    %c0_4 = arith.constant 0 : index
    %c0_5 = arith.constant 0 : index
    %5 = vector.load %arg4[%c0_4, %c0_5] : memref<384x640xbf16, #tpu.memory_space<vmem>>, vector<384x640xbf16>
    %cst = arith.constant dense<0.000000e+00> : vector<8x640xf32>
    %6 = tpu.matmul %4, %5, %cst {dimension_numbers = #tpu.dot_dimension_numbers<[1], [0], [0], [1], [0, 0, 1, 1], [], []>} : vector<8x384xbf16>, vector<384x640xbf16>, vector<8x640xf32> -> vector<8x640xf32>
    %7 = arith.addf %3, %6 : vector<8x640xf32>
    %c0_6 = arith.constant 0 : index
    %c0_7 = arith.constant 0 : index
    %8 = vector.load %arg7[%c0_6, %c0_7] : memref<8x640xf32, #tpu.memory_space<vmem>>, vector<8x640xf32>
    tpu.vector_store %arg7[%c0_6, %c0_7], %7 {strides = array<i32>} : memref<8x640xf32, #tpu.memory_space<vmem>>, vector<8x640xf32>,
    %c0_i32_8 = arith.constant 0 : i32
    %9 = arith.cmpi eq, %arg2, %c0_i32_8 : i32
    %10 = arith.extui %9 : i1 to i32
    %c0_i32_9 = arith.constant 0 : i32
    %11 = arith.cmpi ne, %10, %c0_i32_9 : i32
    scf.if %11 {
      %c0_10 = arith.constant 0 : index
      %c0_11 = arith.constant 0 : index
      %12 = vector.load %arg7[%c0_10, %c0_11] : memref<8x640xf32, #tpu.memory_space<vmem>>, vector<8x640xf32>
      %c0_12 = arith.constant 0 : index
      %c0_13 = arith.constant 0 : index
      %13 = vector.load %arg5[%c0_12, %c0_13] : memref<1x640xf32, #tpu.memory_space<vmem>>, vector<1x640xf32>
      %14 = vector.broadcast %13 : vector<1x640xf32> to vector<8x640xf32>
      %15 = arith.addf %12, %14 : vector<8x640xf32>
      %16 = arith.negf %15 : vector<8x640xf32>
      %17 = math.exp %16 : vector<8x640xf32>
      %cst_14 = arith.constant 1.000000e+00 : f32
      %18 = vector.broadcast %cst_14 : f32 to vector<8x640xf32>
      %19 = arith.addf %18, %17 : vector<8x640xf32>
      %20 = arith.divf %18, %19 : vector<8x640xf32>
      %21 = arith.mulf %15, %20 : vector<8x640xf32>
      %22 = arith.truncf %21 : vector<8x640xf32> to vector<8x640xbf16>
      %c0_15 = arith.constant 0 : index
      %c0_16 = arith.constant 0 : index
      %23 = vector.load %arg6[%c0_15, %c0_16] : memref<8x640xbf16, #tpu.memory_space<vmem>>, vector<8x640xbf16>
      tpu.vector_store %arg6[%c0_15, %c0_16], %22 {strides = array<i32>} : memref<8x640xbf16, #tpu.memory_space<vmem>>, vector<8x640xbf16>,
    } else {
    }
    return
  }
  func.func @transform_0(%arg0: i32, %arg1: i32, %arg2: i32) -> (i32, i32) {
    %c0_i32 = arith.constant 0 : i32
    return %arg0, %arg2 : i32, i32
  }
  func.func @transform_1(%arg0: i32, %arg1: i32, %arg2: i32) -> (i32, i32) {
    %c0_i32 = arith.constant 0 : i32
    return %arg2, %arg1 : i32, i32
  }
  func.func @transform_2(%arg0: i32, %arg1: i32, %arg2: i32) -> (i32, i32) {
    %c0_i32 = arith.constant 0 : i32
    %c0_i32_0 = arith.constant 0 : i32
    return %c0_i32, %arg1 : i32, i32
  }
  func.func @transform_3(%arg0: i32, %arg1: i32, %arg2: i32) -> (i32, i32) {
    %c0_i32 = arith.constant 0 : i32
    return %arg0, %arg1 : i32, i32
  }
}

</mosaic_0001>

<llo_original>
// kernel: tpu_custom_call.1
$region0: #{tpu_custom_call.1}
  #allocation0 [shape = 'u32[]', space=smem, size = 0x4, offset = 0x4, fixed_abs, tag = 'smem constant byte address 0x4 - core index']
  #allocation1 [shape = 'u32[144,128]{1,0:T(1,128)}', space=vmem, size = 0x12000, scoped, tag = 'internal scratch']
  #allocation2 [shape = 'f32[8,640]{1,0:T(8,128)}', space=vmem, size = 0x5000, scoped, tag = 'scratch operand']
  %s0 = inlined_call_operand.hbm [shape: bf16[8,384], index: 0, kind: input, shape index: {}]
  %s1 = inlined_call_operand.hbm [shape: bf16[384,1280], index: 1, kind: input, shape index: {}]
  %s2 = inlined_call_operand.hbm [shape: f32[1,1280], index: 2, kind: input, shape index: {}]
  %s3 = inlined_call_operand.hbm [shape: bf16[8,1280], index: 3, kind: output, shape index: {}]
  %s4 = sld [smem:[#allocation0]]
  $region65: #{tpu_custom_call.1} parent=0
    _
  %s6 = ssub.s32 1, %s4
  %s7 = scalar_select 0, %s6, %s4
  $region1: #{tpu_custom_call.1} parent=0
    #allocation3 [shape = 'u8[6144]{0}', space=vmem, size = 0x1800, scoped, tag = 'input window, operand 0, single buffered']
    #allocation4 [shape = 's32[2]{0}', space=sflag, size = 0x8, scoped, tag = 'scoped memory for tpu_custom_call.1']
    #allocation5 [shape = 's32[2]{0}', space=sflag, size = 0x8, scoped, tag = 'scoped memory for tpu_custom_call.1']
    #allocation6 [shape = 'u8[983040]{0}', space=vmem, size = 0xf0000, scoped, tag = 'input window, operand 1']
    #allocation7 [shape = 's32[2]{0}', space=sflag, size = 0x8, scoped, tag = 'scoped memory for tpu_custom_call.1']
    #allocation8 [shape = 'u8[5120]{0}', space=vmem, size = 0x1400, scoped, tag = 'input window, operand 2']
    #allocation9 [shape = 'u8[20480]{0}', space=vmem, size = 0x5000, scoped, tag = 'output window, operand 0']
    %8 = vsyncpa [#allocation4], 0
    %9 = vsyncpa [#allocation7], 0
    %s10 = scalar_lea.sflag [#allocation7], 1
    %11 = vsyncpa %s10, 0
    %12 = vsyncpa [#allocation5], 0
    %s13 = scalar_lea.sflag [#allocation5], 1
    %14 = vsyncpa %s13, 0
    loop: start=0, step=1, limit=4
    $region2: #{tpu_custom_call.1} parent=1 // loop_pre_header
      _
    $region3: #{tpu_custom_call.1} parent=1 // loop_header
      %s16 = sphi 0, %s20
      %p17 = scmp.ge.s32.totalorder %s16, 4
      %s23 = sphi 0, %s42
      %s24 = sphi 0, %s38
      %s25 = sphi 0, %s34
      %s26 = sphi 0, %s23
      %s27 = sphi 0, %s24
      %s28 = sphi 0, %s25
      %s29 = sphi 0, %s26
      %s30 = sphi 0, %s27
      %s31 = sphi 0, %s28
      %s47 = sphi 0, %s49
      %s50 = sphi 0, %s47
      %s51 = sphi 0, %s50
      %s67 = sphi 0, %s51
      %s75 = sphi 0, %s77
      %s78 = sphi 0, %s75
      %s79 = sphi 0, %s78
      %s95 = sphi 0, %s79
      %s101 = sphi 0, %s103
      %s104 = sphi 0, %s101
      %s105 = sphi 0, %s104
      %s121 = sphi 0, %s105
      %s129 = sphi 0, %s131
      %s132 = sphi 0, %s129
      %s133 = sphi 0, %s132
      %s149 = sphi 0, %s133
    $region4: #{tpu_custom_call.1} parent=1 // loop_header_branch
      %19 = sbr.rel (%p17) target = $region8
    $region5: #{tpu_custom_call.1} parent=1 // loop_body
      %s21 = ssub.s32 %s16, 1
      %s22 = ssub.s32 %s16, 2
      %s32 = sadd.s32 1, %s25
      %p33 = scmp.ge.s32.totalorder %s32, 1
      %s34 = scalar_select %p33, 0, %s32
      %s35 = sadd.s32 1, %s24
      %s36 = scalar_select %p33, %s35, %s24
      %p37 = scmp.ge.s32.totalorder %s36, 2
      %s38 = scalar_select %p37, 0, %s36
      %s39 = sadd.s32 1, %s23
      %s40 = scalar_select %p37, %s39, %s23
      %p41 = scmp.ge.s32.totalorder %s40, 1
      %s42 = scalar_select %p41, 0, %s40
      %s43 = ssub.s32 %s23, %s42
      %s44 = ssub.s32 %s25, %s34
      %s45 = sor.u32 %s43, %s44
      %p46 = scmp.eq.s32.totalorder %s45, 0
      %s48 = sadd.s32 %s47, 1
      %s49 = scalar_select %p46, %s47, %s48
      %p52 = pneg %p46
      %p53 = scmp.eq.s32.totalorder %s16, 1
      %p54 = por %p52, %p53
      %p55 = scmp.ne.s32.totalorder %s47, %s50
      %p56 = scmp.eq.s32.totalorder %s16, 0
      %p57 = por %p55, %p56
      %p58 = scmp.ne.s32.totalorder %s47, %s50
      %p59 = scmp.eq.s32.totalorder %s21, 1
      %p60 = por %p58, %p59
      %p61 = scmp.ne.s32.totalorder %s50, %s51
      %p62 = scmp.eq.s32.totalorder %s21, 0
      %p63 = por %p61, %p62
      %p64 = scmp.ne.s32.totalorder %s50, %s51
      %p65 = scmp.eq.s32.totalorder %s22, 1
      %p66 = por %p64, %p65
      %p68 = scmp.ne.s32.totalorder %s51, %s67
      %p69 = scmp.eq.s32.totalorder %s22, 0
      %p70 = por %p68, %p69
      %s71 = ssub.s32 %s25, %s34
      %s72 = ssub.s32 %s24, %s38
      %s73 = sor.u32 %s71, %s72
      %p74 = scmp.eq.s32.totalorder %s73, 0
      %s76 = sadd.s32 %s75, 1
      %s77 = scalar_select %p74, %s75, %s76
      %p80 = pneg %p74
      %p81 = scmp.eq.s32.totalorder %s16, 1
      %p82 = por %p80, %p81
      %p83 = scmp.ne.s32.totalorder %s75, %s78
      %p84 = scmp.eq.s32.totalorder %s16, 0
      %p85 = por %p83, %p84
      %p86 = scmp.ne.s32.totalorder %s75, %s78
      %p87 = scmp.eq.s32.totalorder %s21, 1
      %p88 = por %p86, %p87
      %p89 = scmp.ne.s32.totalorder %s78, %s79
      %p90 = scmp.eq.s32.totalorder %s21, 0
      %p91 = por %p89, %p90
      %p92 = scmp.ne.s32.totalorder %s78, %s79
      %p93 = scmp.eq.s32.totalorder %s22, 1
      %p94 = por %p92, %p93
      %p96 = scmp.ne.s32.totalorder %s79, %s95
      %p97 = scmp.eq.s32.totalorder %s22, 0
      %p98 = por %p96, %p97
      %s99 = ssub.s32 %s24, %s38
      %p100 = scmp.eq.s32.totalorder %s99, 0
      %s102 = sadd.s32 %s101, 1
      %s103 = scalar_select %p100, %s101, %s102
      %p106 = pneg %p100
      %p107 = scmp.eq.s32.totalorder %s16, 1
      %p108 = por %p106, %p107
      %p109 = scmp.ne.s32.totalorder %s101, %s104
      %p110 = scmp.eq.s32.totalorder %s16, 0
      %p111 = por %p109, %p110
      %p112 = scmp.ne.s32.totalorder %s101, %s104
      %p113 = scmp.eq.s32.totalorder %s21, 1
      %p114 = por %p112, %p113
      %p115 = scmp.ne.s32.totalorder %s104, %s105
      %p116 = scmp.eq.s32.totalorder %s21, 0
      %p117 = por %p115, %p116
      %p118 = scmp.ne.s32.totalorder %s104, %s105
      %p119 = scmp.eq.s32.totalorder %s22, 1
      %p120 = por %p118, %p119
      %p122 = scmp.ne.s32.totalorder %s105, %s121
      %p123 = scmp.eq.s32.totalorder %s22, 0
      %p124 = por %p122, %p123
      %s125 = ssub.s32 %s23, %s42
      %s126 = ssub.s32 %s24, %s38
      %s127 = sor.u32 %s125, %s126
      %p128 = scmp.eq.s32.totalorder %s127, 0
      %s130 = sadd.s32 %s129, 1
      %s131 = scalar_select %p128, %s129, %s130
      %p134 = pneg %p128
      %p135 = scmp.eq.s32.totalorder %s16, 1
      %p136 = por %p134, %p135
      %p137 = scmp.ne.s32.totalorder %s129, %s132
      %p138 = scmp.eq.s32.totalorder %s16, 0
      %p139 = por %p137, %p138
      %p140 = scmp.ne.s32.totalorder %s129, %s132
      %p141 = scmp.eq.s32.totalorder %s21, 1
      %p142 = por %p140, %p141
      %p143 = scmp.ne.s32.totalorder %s132, %s133
      %p144 = scmp.eq.s32.totalorder %s21, 0
      %p145 = por %p143, %p144
      %p146 = scmp.ne.s32.totalorder %s132, %s133
      %p147 = scmp.eq.s32.totalorder %s22, 1
      %p148 = por %p146, %p147
      %p150 = scmp.ne.s32.totalorder %s133, %s149
      %p151 = scmp.eq.s32.totalorder %s22, 0
      %p152 = por %p150, %p151
      %p153 = scmp.le.s32.totalorder 1, %s16
      %p154 = scmp.lt.s32.totalorder %s16, 3
      %p155 = pnand %p153, %p154
      %p156 = pneg %p155
      // Predicated region
      $region9: #{tpu_custom_call.1} parent=5 // pred_check
        _
      $region10: #{tpu_custom_call.1} parent=5 // pred_check_branch
        %158 = sbr.rel (%p155) target = $region12
      $region11: #{tpu_custom_call.1} parent=5 // pred_region
        %s159 = ssub.s32 %s16, 1
        // Predicated region
        $region13: #{tpu_custom_call.1} parent=11 // pred_check
          %p160 = pneg %p63
        $region14: #{tpu_custom_call.1} parent=11 // pred_check_branch
          %162 = sbr.rel (%p160) target = $region16
        $region15: #{tpu_custom_call.1} parent=11 // pred_region
          %s163 = smul.u32 3, %s28
          %s165 = ssub.s32 192, 192
          %166 = vsyncadd [#allocation4], %s165
          %s167 = smul.addr %s26, 3
          %s168 = sadd.s32 %s163, %s167
          %s169 = smul.addr %s168, 64
          %s170 = scalar_lea.hbm %s0, %s169
          %s172 = sshll.u32 [#allocation3], 4
          %s173 = int_to_ptr.vmem [resolvable:$true] %s172
          %175 = dma.hbm_to_vmem [thread:$0]  %s170, 192, %s173, [#allocation4]
        $region16: #{tpu_custom_call.1} parent=11 // pred_fallthru
          _
      $region12: #{tpu_custom_call.1} parent=5 // pred_fallthru
        _
      %p176 = scmp.lt.s32.totalorder %s16, 2
      // Predicated region
      $region17: #{tpu_custom_call.1} parent=5 // pred_check
        %p177 = pneg %p176
      $region18: #{tpu_custom_call.1} parent=5 // pred_check_branch
        %179 = sbr.rel (%p177) target = $region20
      $region19: #{tpu_custom_call.1} parent=5 // pred_region
        // Predicated region
        $region21: #{tpu_custom_call.1} parent=19 // pred_check
          %p180 = pneg %p85
        $region22: #{tpu_custom_call.1} parent=19 // pred_check_branch
          %182 = sbr.rel (%p180) target = $region24
        $region23: #{tpu_custom_call.1} parent=19 // pred_region
          %s183 = sand.u32 %s16, 1
          %s184 = scalar_lea.sflag [#allocation7], %s183
          %s185 = sand.u32 %s75, 1
          %s186 = smul.addr %s185, 960
          %s187 = scalar_lea.vmem [#allocation6], %s186
          %s188 = smul.u32 48, %s25
          %s189 = smul.u32 5, %s24
          %s191 = ssub.s32 15360, 15360
          %192 = vsyncadd %s184, %s191
          %s193 = smul.addr %s188, 10
          %s194 = sadd.s32 %s189, %s193
          %s195 = smul.addr %s194, 64
          %s196 = scalar_lea.hbm %s1, %s195
          %s197 = sshll.u32 %s187, 4
          %s198 = int_to_ptr.vmem [resolvable:$true] %s197
          %203 = dma.hbm_to_vmem [thread:$0]  %s196, 15360, %s198, %s184, 640, 320, 20
        $region24: #{tpu_custom_call.1} parent=19 // pred_fallthru
          _
        // Predicated region
        $region25: #{tpu_custom_call.1} parent=19 // pred_check
          %p204 = pneg %p111
        $region26: #{tpu_custom_call.1} parent=19 // pred_check_branch
          %206 = sbr.rel (%p204) target = $region28
        $region27: #{tpu_custom_call.1} parent=19 // pred_region
          %s207 = sand.u32 %s16, 1
          %s208 = scalar_lea.sflag [#allocation7], %s207
          %s209 = sand.u32 %s101, 1
          %s210 = smul.addr %s209, 5
          %s211 = scalar_lea.vmem [#allocation8], %s210
          %s212 = smul.u32 5, %s24
          %s214 = ssub.s32 80, 80
          %215 = vsyncadd %s208, %s214
          %s216 = smul.addr %s212, 16
          %s217 = scalar_lea.hbm %s2, %s216
          %s219 = sshll.u32 %s211, 4
          %s220 = int_to_ptr.vmem [resolvable:$true] %s219
          %222 = dma.hbm_to_vmem [thread:$0]  %s217, 80, %s220, %s208
        $region28: #{tpu_custom_call.1} parent=19 // pred_fallthru
          _
      $region20: #{tpu_custom_call.1} parent=5 // pred_fallthru
        _
      %p223 = scmp.le.s32.totalorder 1, %s16
      %p224 = scmp.lt.s32.totalorder %s16, 3
      %p225 = pnand %p223, %p224
      %p226 = pneg %p225
      // Predicated region
      $region29: #{tpu_custom_call.1} parent=5 // pred_check
        _
      $region30: #{tpu_custom_call.1} parent=5 // pred_check_branch
        %228 = sbr.rel (%p225) target = $region32
      $region31: #{tpu_custom_call.1} parent=5 // pred_region
        %s229 = ssub.s32 %s16, 1
        // Predicated region
        $region33: #{tpu_custom_call.1} parent=31 // pred_check
          %p230 = pneg %p63
        $region34: #{tpu_custom_call.1} parent=31 // pred_check_branch
          %232 = sbr.rel (%p230) target = $region36
        $region35: #{tpu_custom_call.1} parent=31 // pred_region
          %233 = dma.done [#allocation4], 192
        $region36: #{tpu_custom_call.1} parent=31 // pred_fallthru
          _
        %s234 = sand.u32 %s21, 1
        %s235 = scalar_lea.sflag [#allocation7], %s234
        %s236 = sand.u32 %s78, 1
        %s237 = smul.addr %s236, 960
        %s238 = scalar_lea.vmem [#allocation6], %s237
        // Predicated region
        $region37: #{tpu_custom_call.1} parent=31 // pred_check
          %p239 = pneg %p91
        $region38: #{tpu_custom_call.1} parent=31 // pred_check_branch
          %241 = sbr.rel (%p239) target = $region40
        $region39: #{tpu_custom_call.1} parent=31 // pred_region
          %242 = dma.done %s235, 15360
        $region40: #{tpu_custom_call.1} parent=31 // pred_fallthru
          _
        %s243 = sand.u32 %s21, 1
        %s244 = scalar_lea.sflag [#allocation7], %s243
        %s245 = sand.u32 %s104, 1
        %s246 = smul.addr %s245, 5
        %s247 = scalar_lea.vmem [#allocation8], %s246
        // Predicated region
        $region41: #{tpu_custom_call.1} parent=31 // pred_check
          %p248 = pneg %p117
        $region42: #{tpu_custom_call.1} parent=31 // pred_check_branch
          %250 = sbr.rel (%p248) target = $region44
        $region43: #{tpu_custom_call.1} parent=31 // pred_region
          %251 = dma.done %s244, 80
        $region44: #{tpu_custom_call.1} parent=31 // pred_fallthru
          _
        %p252 = pneg %p63
        %p253 = pneg %p60
        %s254 = sand.u32 %s21, 1
        %s255 = scalar_lea.sflag [#allocation7], %s254
        %s256 = sand.u32 %s78, 1
        %s257 = smul.addr %s256, 960
        %s258 = scalar_lea.vmem [#allocation6], %s257
        %p259 = pneg %p91
        %p260 = pneg %p88
        %s261 = sand.u32 %s21, 1
        %s262 = scalar_lea.sflag [#allocation7], %s261
        %s263 = sand.u32 %s104, 1
        %s264 = smul.addr %s263, 5
        %s265 = scalar_lea.vmem [#allocation8], %s264
        %p266 = pneg %p117
        %p267 = pneg %p114
        %p268 = pneg %p145
        %p269 = pneg %p142
        %s270 = sand.u32 %s132, 1
        %s271 = scalar_lea.sflag [#allocation5], %s270
        %s272 = sand.u32 %s132, 1
        %s273 = smul.addr %s272, 20
        %s274 = scalar_lea.vmem [#allocation9], %s273
        %s275 = smul.u32 3, %s28
        %s276 = smul.u32 48, %s28
        %s277 = smul.u32 5, %s27
        %s278 = smul.u32 5, %s27
        %s279 = smul.u32 5, %s27
        %p281 = scmp.eq.s32.totalorder %s28, 0
        // Predicated region
        $region45: #{tpu_custom_call.1} parent=31 // pred_check
          %p282 = pneg %p281
        $region46: #{tpu_custom_call.1} parent=31 // pred_check_branch
          %284 = sbr.rel (%p282) target = $region48
        $region47: #{tpu_custom_call.1} parent=31 // pred_region
          %285 = vst [vmem:[#allocation2] sm:$0xff] 0.0
          %286 = vst [vmem:[#allocation2 + $0x8] sm:$0xff] 0.0
          %287 = vst [vmem:[#allocation2 + $0x10] sm:$0xff] 0.0
          %288 = vst [vmem:[#allocation2 + $0x18] sm:$0xff] 0.0
          %289 = vst [vmem:[#allocation2 + $0x20] sm:$0xff] 0.0
        $region48: #{tpu_custom_call.1} parent=31 // pred_fallthru
          _
        %v290 = vld [vmem:[#allocation2] sm:$0xff]
        %v291 = vld [vmem:[#allocation2 + $0x8] sm:$0xff]
        %v292 = vld [vmem:[#allocation2 + $0x10] sm:$0xff]
        %v293 = vld [vmem:[#allocation2 + $0x18] sm:$0xff]
        %v294 = vld [vmem:[#allocation2 + $0x20] sm:$0xff]
        %v295 = vld [vmem:[#allocation3] sm:$0xff]
        %v296 = vld [vmem:[#allocation3 + $0x8] sm:$0xf]
        %v297 = vld [vmem:[%s238] sm:$0xff]
        %v298 = vld [vmem:[%s238 + $0x8] sm:$0xff]
        %v299 = vld [vmem:[%s238 + $0x10] sm:$0xf]
        %v300 = vld [vmem:[%s238 + $0x14] sm:$0xff]
        %v301 = vld [vmem:[%s238 + $0x1c] sm:$0xff]
        %v302 = vld [vmem:[%s238 + $0x24] sm:$0xf]
        %v303 = vld [vmem:[%s238 + $0x28] sm:$0xff]
        %v304 = vld [vmem:[%s238 + $0x30] sm:$0xff]
        %v305 = vld [vmem:[%s238 + $0x38] sm:$0xf]
        %v306 = vld [vmem:[%s238 + $0x3c] sm:$0xff]
        %v307 = vld [vmem:[%s238 + $0x44] sm:$0xff]
        %v308 = vld [vmem:[%s238 + $0x4c] sm:$0xf]
        %v309 = vld [vmem:[%s238 + $0x50] sm:$0xff]
        %v310 = vld [vmem:[%s238 + $0x58] sm:$0xff]
        %v311 = vld [vmem:[%s238 + $0x60] sm:$0xf]
        %v312 = vld [vmem:[%s238 + $0x64] sm:$0xff]
        %v313 = vld [vmem:[%s238 + $0x6c] sm:$0xff]
        %v314 = vld [vmem:[%s238 + $0x74] sm:$0xf]
        %v315 = vld [vmem:[%s238 + $0x78] sm:$0xff]
        %v316 = vld [vmem:[%s238 + $0x80] sm:$0xff]
        %v317 = vld [vmem:[%s238 + $0x88] sm:$0xf]
        %v318 = vld [vmem:[%s238 + $0x8c] sm:$0xff]
        %v319 = vld [vmem:[%s238 + $0x94] sm:$0xff]
        %v320 = vld [vmem:[%s238 + $0x9c] sm:$0xf]
        %v321 = vld [vmem:[%s238 + $0xa0] sm:$0xff]
        %v322 = vld [vmem:[%s238 + $0xa8] sm:$0xff]
        %v323 = vld [vmem:[%s238 + $0xb0] sm:$0xf]
        %v324 = vld [vmem:[%s238 + $0xb4] sm:$0xff]
        %v325 = vld [vmem:[%s238 + $0xbc] sm:$0xff]
        %v326 = vld [vmem:[%s238 + $0xc4] sm:$0xf]
        %v327 = vld [vmem:[%s238 + $0xc8] sm:$0xff]
        %v328 = vld [vmem:[%s238 + $0xd0] sm:$0xff]
        %v329 = vld [vmem:[%s238 + $0xd8] sm:$0xf]
        %v330 = vld [vmem:[%s238 + $0xdc] sm:$0xff]
        %v331 = vld [vmem:[%s238 + $0xe4] sm:$0xff]
        %v332 = vld [vmem:[%s238 + $0xec] sm:$0xf]
        %v333 = vld [vmem:[%s238 + $0xf0] sm:$0xff]
        %v334 = vld [vmem:[%s238 + $0xf8] sm:$0xff]
        %v335 = vld [vmem:[%s238 + $0x100] sm:$0xf]
        %v336 = vld [vmem:[%s238 + $0x104] sm:$0xff]
        %v337 = vld [vmem:[%s238 + $0x10c] sm:$0xff]
        %v338 = vld [vmem:[%s238 + $0x114] sm:$0xf]
        %v339 = vld [vmem:[%s238 + $0x118] sm:$0xff]
        %v340 = vld [vmem:[%s238 + $0x120] sm:$0xff]
        %v341 = vld [vmem:[%s238 + $0x128] sm:$0xf]
        %v342 = vld [vmem:[%s238 + $0x12c] sm:$0xff]
        %v343 = vld [vmem:[%s238 + $0x134] sm:$0xff]
        %v344 = vld [vmem:[%s238 + $0x13c] sm:$0xf]
        %v345 = vld [vmem:[%s238 + $0x140] sm:$0xff]
        %v346 = vld [vmem:[%s238 + $0x148] sm:$0xff]
        %v347 = vld [vmem:[%s238 + $0x150] sm:$0xf]
        %v348 = vld [vmem:[%s238 + $0x154] sm:$0xff]
        %v349 = vld [vmem:[%s238 + $0x15c] sm:$0xff]
        %v350 = vld [vmem:[%s238 + $0x164] sm:$0xf]
        %v351 = vld [vmem:[%s238 + $0x168] sm:$0xff]
        %v352 = vld [vmem:[%s238 + $0x170] sm:$0xff]
        %v353 = vld [vmem:[%s238 + $0x178] sm:$0xf]
        %v354 = vld [vmem:[%s238 + $0x17c] sm:$0xff]
        %v355 = vld [vmem:[%s238 + $0x184] sm:$0xff]
        %v356 = vld [vmem:[%s238 + $0x18c] sm:$0xf]
        %v357 = vld [vmem:[%s238 + $0x190] sm:$0xff]
        %v358 = vld [vmem:[%s238 + $0x198] sm:$0xff]
        %v359 = vld [vmem:[%s238 + $0x1a0] sm:$0xf]
        %v360 = vld [vmem:[%s238 + $0x1a4] sm:$0xff]
        %v361 = vld [vmem:[%s238 + $0x1ac] sm:$0xff]
        %v362 = vld [vmem:[%s238 + $0x1b4] sm:$0xf]
        %v363 = vld [vmem:[%s238 + $0x1b8] sm:$0xff]
        %v364 = vld [vmem:[%s238 + $0x1c0] sm:$0xff]
        %v365 = vld [vmem:[%s238 + $0x1c8] sm:$0xf]
        %v366 = vld [vmem:[%s238 + $0x1cc] sm:$0xff]
        %v367 = vld [vmem:[%s238 + $0x1d4] sm:$0xff]
        %v368 = vld [vmem:[%s238 + $0x1dc] sm:$0xf]
        %v369 = vld [vmem:[%s238 + $0x1e0] sm:$0xff]
        %v370 = vld [vmem:[%s238 + $0x1e8] sm:$0xff]
        %v371 = vld [vmem:[%s238 + $0x1f0] sm:$0xf]
        %v372 = vld [vmem:[%s238 + $0x1f4] sm:$0xff]
        %v373 = vld [vmem:[%s238 + $0x1fc] sm:$0xff]
        %v374 = vld [vmem:[%s238 + $0x204] sm:$0xf]
        %v375 = vld [vmem:[%s238 + $0x208] sm:$0xff]
        %v376 = vld [vmem:[%s238 + $0x210] sm:$0xff]
        %v377 = vld [vmem:[%s238 + $0x218] sm:$0xf]
        %v378 = vld [vmem:[%s238 + $0x21c] sm:$0xff]
        %v379 = vld [vmem:[%s238 + $0x224] sm:$0xff]
        %v380 = vld [vmem:[%s238 + $0x22c] sm:$0xf]
        %v381 = vld [vmem:[%s238 + $0x230] sm:$0xff]
        %v382 = vld [vmem:[%s238 + $0x238] sm:$0xff]
        %v383 = vld [vmem:[%s238 + $0x240] sm:$0xf]
        %v384 = vld [vmem:[%s238 + $0x244] sm:$0xff]
        %v385 = vld [vmem:[%s238 + $0x24c] sm:$0xff]
        %v386 = vld [vmem:[%s238 + $0x254] sm:$0xf]
        %v387 = vld [vmem:[%s238 + $0x258] sm:$0xff]
        %v388 = vld [vmem:[%s238 + $0x260] sm:$0xff]
        %v389 = vld [vmem:[%s238 + $0x268] sm:$0xf]
        %v390 = vld [vmem:[%s238 + $0x26c] sm:$0xff]
        %v391 = vld [vmem:[%s238 + $0x274] sm:$0xff]
        %v392 = vld [vmem:[%s238 + $0x27c] sm:$0xf]
        %v393 = vld [vmem:[%s238 + $0x280] sm:$0xff]
        %v394 = vld [vmem:[%s238 + $0x288] sm:$0xff]
        %v395 = vld [vmem:[%s238 + $0x290] sm:$0xf]
        %v396 = vld [vmem:[%s238 + $0x294] sm:$0xff]
        %v397 = vld [vmem:[%s238 + $0x29c] sm:$0xff]
        %v398 = vld [vmem:[%s238 + $0x2a4] sm:$0xf]
        %v399 = vld [vmem:[%s238 + $0x2a8] sm:$0xff]
        %v400 = vld [vmem:[%s238 + $0x2b0] sm:$0xff]
        %v401 = vld [vmem:[%s238 + $0x2b8] sm:$0xf]
        %v402 = vld [vmem:[%s238 + $0x2bc] sm:$0xff]
        %v403 = vld [vmem:[%s238 + $0x2c4] sm:$0xff]
        %v404 = vld [vmem:[%s238 + $0x2cc] sm:$0xf]
        %v405 = vld [vmem:[%s238 + $0x2d0] sm:$0xff]
        %v406 = vld [vmem:[%s238 + $0x2d8] sm:$0xff]
        %v407 = vld [vmem:[%s238 + $0x2e0] sm:$0xf]
        %v408 = vld [vmem:[%s238 + $0x2e4] sm:$0xff]
        %v409 = vld [vmem:[%s238 + $0x2ec] sm:$0xff]
        %v410 = vld [vmem:[%s238 + $0x2f4] sm:$0xf]
        %v411 = vld [vmem:[%s238 + $0x2f8] sm:$0xff]
        %v412 = vld [vmem:[%s238 + $0x300] sm:$0xff]
        %v413 = vld [vmem:[%s238 + $0x308] sm:$0xf]
        %v414 = vld [vmem:[%s238 + $0x30c] sm:$0xff]
        %v415 = vld [vmem:[%s238 + $0x314] sm:$0xff]
        %v416 = vld [vmem:[%s238 + $0x31c] sm:$0xf]
        %v417 = vld [vmem:[%s238 + $0x320] sm:$0xff]
        %v418 = vld [vmem:[%s238 + $0x328] sm:$0xff]
        %v419 = vld [vmem:[%s238 + $0x330] sm:$0xf]
        %v420 = vld [vmem:[%s238 + $0x334] sm:$0xff]
        %v421 = vld [vmem:[%s238 + $0x33c] sm:$0xff]
        %v422 = vld [vmem:[%s238 + $0x344] sm:$0xf]
        %v423 = vld [vmem:[%s238 + $0x348] sm:$0xff]
        %v424 = vld [vmem:[%s238 + $0x350] sm:$0xff]
        %v425 = vld [vmem:[%s238 + $0x358] sm:$0xf]
        %v426 = vld [vmem:[%s238 + $0x35c] sm:$0xff]
        %v427 = vld [vmem:[%s238 + $0x364] sm:$0xff]
        %v428 = vld [vmem:[%s238 + $0x36c] sm:$0xf]
        %v429 = vld [vmem:[%s238 + $0x370] sm:$0xff]
        %v430 = vld [vmem:[%s238 + $0x378] sm:$0xff]
        %v431 = vld [vmem:[%s238 + $0x380] sm:$0xf]
        %v432 = vld [vmem:[%s238 + $0x384] sm:$0xff]
        %v433 = vld [vmem:[%s238 + $0x38c] sm:$0xff]
        %v434 = vld [vmem:[%s238 + $0x394] sm:$0xf]
        %v435 = vld [vmem:[%s238 + $0x398] sm:$0xff]
        %v436 = vld [vmem:[%s238 + $0x3a0] sm:$0xff]
        %v437 = vld [vmem:[%s238 + $0x3a8] sm:$0xf]
        %v438 = vld [vmem:[%s238 + $0x3ac] sm:$0xff]
        %v439 = vld [vmem:[%s238 + $0x3b4] sm:$0xff]
        %v440 = vld [vmem:[%s238 + $0x3bc] sm:$0xf]
        %v443 = vunpack.c.l.b16 %v295
        %v444 = vunpack.c.h.b16 %v295
        %v445 = vunpack.c.l.b16 %v296
        %v446 = vpack.c.b16 %v443, %v443
        %v447 = vpack.c.b16 %v444, %v444
        %v448 = vpack.c.b16 %v445, %v445
        %v596 = vunpack.c.l.b16 %v297
        %v597 = vunpack.c.h.b16 %v297
        %v598 = vunpack.c.l.b16 %v298
        %v599 = vunpack.c.h.b16 %v298
        %v600 = vunpack.c.l.b16 %v299
        %v601 = vunpack.c.l.b16 %v300
        %v602 = vunpack.c.h.b16 %v300
        %v603 = vunpack.c.l.b16 %v301
        %v604 = vunpack.c.h.b16 %v301
        %v605 = vunpack.c.l.b16 %v302
        %v606 = vunpack.c.l.b16 %v303
        %v607 = vunpack.c.h.b16 %v303
        %v608 = vunpack.c.l.b16 %v304
        %v609 = vunpack.c.h.b16 %v304
        %v610 = vunpack.c.l.b16 %v305
        %v611 = vunpack.c.l.b16 %v306
        %v612 = vunpack.c.h.b16 %v306
        %v613 = vunpack.c.l.b16 %v307
        %v614 = vunpack.c.h.b16 %v307
        %v615 = vunpack.c.l.b16 %v308
        %v616 = vunpack.c.l.b16 %v309
        %v617 = vunpack.c.h.b16 %v309
        %v618 = vunpack.c.l.b16 %v310
        %v619 = vunpack.c.h.b16 %v310
        %v620 = vunpack.c.l.b16 %v311
        %v621 = vunpack.c.l.b16 %v312
        %v622 = vunpack.c.h.b16 %v312
        %v623 = vunpack.c.l.b16 %v313
        %v624 = vunpack.c.h.b16 %v313
        %v625 = vunpack.c.l.b16 %v314
        %v626 = vunpack.c.l.b16 %v315
        %v627 = vunpack.c.h.b16 %v315
        %v628 = vunpack.c.l.b16 %v316
        %v629 = vunpack.c.h.b16 %v316
        %v630 = vunpack.c.l.b16 %v317
        %v631 = vunpack.c.l.b16 %v318
        %v632 = vunpack.c.h.b16 %v318
        %v633 = vunpack.c.l.b16 %v319
        %v634 = vunpack.c.h.b16 %v319
        %v635 = vunpack.c.l.b16 %v320
        %v636 = vunpack.c.l.b16 %v321
        %v637 = vunpack.c.h.b16 %v321
        %v638 = vunpack.c.l.b16 %v322
        %v639 = vunpack.c.h.b16 %v322
        %v640 = vunpack.c.l.b16 %v323
        %v641 = vunpack.c.l.b16 %v324
        %v642 = vunpack.c.h.b16 %v324
        %v643 = vunpack.c.l.b16 %v325
        %v644 = vunpack.c.h.b16 %v325
        %v645 = vunpack.c.l.b16 %v326
        %v646 = vunpack.c.l.b16 %v327
        %v647 = vunpack.c.h.b16 %v327
        %v648 = vunpack.c.l.b16 %v328
        %v649 = vunpack.c.h.b16 %v328
        %v650 = vunpack.c.l.b16 %v329
        %v651 = vunpack.c.l.b16 %v330
        %v652 = vunpack.c.h.b16 %v330
        %v653 = vunpack.c.l.b16 %v331
        %v654 = vunpack.c.h.b16 %v331
        %v655 = vunpack.c.l.b16 %v332
        %v656 = vunpack.c.l.b16 %v333
        %v657 = vunpack.c.h.b16 %v333
        %v658 = vunpack.c.l.b16 %v334
        %v659 = vunpack.c.h.b16 %v334
        %v660 = vunpack.c.l.b16 %v335
        %v661 = vunpack.c.l.b16 %v336
        %v662 = vunpack.c.h.b16 %v336
        %v663 = vunpack.c.l.b16 %v337
        %v664 = vunpack.c.h.b16 %v337
        %v665 = vunpack.c.l.b16 %v338
        %v666 = vunpack.c.l.b16 %v339
        %v667 = vunpack.c.h.b16 %v339
        %v668 = vunpack.c.l.b16 %v340
        %v669 = vunpack.c.h.b16 %v340
        %v670 = vunpack.c.l.b16 %v341
        %v671 = vunpack.c.l.b16 %v342
        %v672 = vunpack.c.h.b16 %v342
        %v673 = vunpack.c.l.b16 %v343
        %v674 = vunpack.c.h.b16 %v343
        %v675 = vunpack.c.l.b16 %v344
        %v676 = vunpack.c.l.b16 %v345
        %v677 = vunpack.c.h.b16 %v345
        %v678 = vunpack.c.l.b16 %v346
        %v679 = vunpack.c.h.b16 %v346
        %v680 = vunpack.c.l.b16 %v347
        %v681 = vunpack.c.l.b16 %v348
        %v682 = vunpack.c.h.b16 %v348
        %v683 = vunpack.c.l.b16 %v349
        %v684 = vunpack.c.h.b16 %v349
        %v685 = vunpack.c.l.b16 %v350
        %v686 = vunpack.c.l.b16 %v351
        %v687 = vunpack.c.h.b16 %v351
        %v688 = vunpack.c.l.b16 %v352
        %v689 = vunpack.c.h.b16 %v352
        %v690 = vunpack.c.l.b16 %v353
        %v691 = vunpack.c.l.b16 %v354
        %v692 = vunpack.c.h.b16 %v354
        %v693 = vunpack.c.l.b16 %v355
        %v694 = vunpack.c.h.b16 %v355
        %v695 = vunpack.c.l.b16 %v356
        %v696 = vunpack.c.l.b16 %v357
        %v697 = vunpack.c.h.b16 %v357
        %v698 = vunpack.c.l.b16 %v358
        %v699 = vunpack.c.h.b16 %v358
        %v700 = vunpack.c.l.b16 %v359
        %v701 = vunpack.c.l.b16 %v360
        %v702 = vunpack.c.h.b16 %v360
        %v703 = vunpack.c.l.b16 %v361
        %v704 = vunpack.c.h.b16 %v361
        %v705 = vunpack.c.l.b16 %v362
        %v706 = vunpack.c.l.b16 %v363
        %v707 = vunpack.c.h.b16 %v363
        %v708 = vunpack.c.l.b16 %v364
        %v709 = vunpack.c.h.b16 %v364
        %v710 = vunpack.c.l.b16 %v365
        %v711 = vunpack.c.l.b16 %v366
        %v712 = vunpack.c.h.b16 %v366
        %v713 = vunpack.c.l.b16 %v367
        %v714 = vunpack.c.h.b16 %v367
        %v715 = vunpack.c.l.b16 %v368
        %v716 = vunpack.c.l.b16 %v369
        %v717 = vunpack.c.h.b16 %v369
        %v718 = vunpack.c.l.b16 %v370
        %v719 = vunpack.c.h.b16 %v370
        %v720 = vunpack.c.l.b16 %v371
        %v721 = vunpack.c.l.b16 %v372
        %v722 = vunpack.c.h.b16 %v372
        %v723 = vunpack.c.l.b16 %v373
        %v724 = vunpack.c.h.b16 %v373
        %v725 = vunpack.c.l.b16 %v374
        %v726 = vunpack.c.l.b16 %v375
        %v727 = vunpack.c.h.b16 %v375
        %v728 = vunpack.c.l.b16 %v376
        %v729 = vunpack.c.h.b16 %v376
        %v730 = vunpack.c.l.b16 %v377
        %v731 = vunpack.c.l.b16 %v378
        %v732 = vunpack.c.h.b16 %v378
        %v733 = vunpack.c.l.b16 %v379
        %v734 = vunpack.c.h.b16 %v379
        %v735 = vunpack.c.l.b16 %v380
        %v736 = vunpack.c.l.b16 %v381
        %v737 = vunpack.c.h.b16 %v381
        %v738 = vunpack.c.l.b16 %v382
        %v739 = vunpack.c.h.b16 %v382
        %v740 = vunpack.c.l.b16 %v383
        %v741 = vunpack.c.l.b16 %v384
        %v742 = vunpack.c.h.b16 %v384
        %v743 = vunpack.c.l.b16 %v385
        %v744 = vunpack.c.h.b16 %v385
        %v745 = vunpack.c.l.b16 %v386
        %v746 = vunpack.c.l.b16 %v387
        %v747 = vunpack.c.h.b16 %v387
        %v748 = vunpack.c.l.b16 %v388
        %v749 = vunpack.c.h.b16 %v388
        %v750 = vunpack.c.l.b16 %v389
        %v751 = vunpack.c.l.b16 %v390
        %v752 = vunpack.c.h.b16 %v390
        %v753 = vunpack.c.l.b16 %v391
        %v754 = vunpack.c.h.b16 %v391
        %v755 = vunpack.c.l.b16 %v392
        %v756 = vunpack.c.l.b16 %v393
        %v757 = vunpack.c.h.b16 %v393
        %v758 = vunpack.c.l.b16 %v394
        %v759 = vunpack.c.h.b16 %v394
        %v760 = vunpack.c.l.b16 %v395
        %v761 = vunpack.c.l.b16 %v396
        %v762 = vunpack.c.h.b16 %v396
        %v763 = vunpack.c.l.b16 %v397
        %v764 = vunpack.c.h.b16 %v397
        %v765 = vunpack.c.l.b16 %v398
        %v766 = vunpack.c.l.b16 %v399
        %v767 = vunpack.c.h.b16 %v399
        %v768 = vunpack.c.l.b16 %v400
        %v769 = vunpack.c.h.b16 %v400
        %v770 = vunpack.c.l.b16 %v401
        %v771 = vunpack.c.l.b16 %v402
        %v772 = vunpack.c.h.b16 %v402
        %v773 = vunpack.c.l.b16 %v403
        %v774 = vunpack.c.h.b16 %v403
        %v775 = vunpack.c.l.b16 %v404
        %v776 = vunpack.c.l.b16 %v405
        %v777 = vunpack.c.h.b16 %v405
        %v778 = vunpack.c.l.b16 %v406
        %v779 = vunpack.c.h.b16 %v406
        %v780 = vunpack.c.l.b16 %v407
        %v781 = vunpack.c.l.b16 %v408
        %v782 = vunpack.c.h.b16 %v408
        %v783 = vunpack.c.l.b16 %v409
        %v784 = vunpack.c.h.b16 %v409
        %v785 = vunpack.c.l.b16 %v410
        %v786 = vunpack.c.l.b16 %v411
        %v787 = vunpack.c.h.b16 %v411
        %v788 = vunpack.c.l.b16 %v412
        %v789 = vunpack.c.h.b16 %v412
        %v790 = vunpack.c.l.b16 %v413
        %v791 = vunpack.c.l.b16 %v414
        %v792 = vunpack.c.h.b16 %v414
        %v793 = vunpack.c.l.b16 %v415
        %v794 = vunpack.c.h.b16 %v415
        %v795 = vunpack.c.l.b16 %v416
        %v796 = vunpack.c.l.b16 %v417
        %v797 = vunpack.c.h.b16 %v417
        %v798 = vunpack.c.l.b16 %v418
        %v799 = vunpack.c.h.b16 %v418
        %v800 = vunpack.c.l.b16 %v419
        %v801 = vunpack.c.l.b16 %v420
        %v802 = vunpack.c.h.b16 %v420
        %v803 = vunpack.c.l.b16 %v421
        %v804 = vunpack.c.h.b16 %v421
        %v805 = vunpack.c.l.b16 %v422
        %v806 = vunpack.c.l.b16 %v423
        %v807 = vunpack.c.h.b16 %v423
        %v808 = vunpack.c.l.b16 %v424
        %v809 = vunpack.c.h.b16 %v424
        %v810 = vunpack.c.l.b16 %v425
        %v811 = vunpack.c.l.b16 %v426
        %v812 = vunpack.c.h.b16 %v426
        %v813 = vunpack.c.l.b16 %v427
        %v814 = vunpack.c.h.b16 %v427
        %v815 = vunpack.c.l.b16 %v428
        %v816 = vunpack.c.l.b16 %v429
        %v817 = vunpack.c.h.b16 %v429
        %v818 = vunpack.c.l.b16 %v430
        %v819 = vunpack.c.h.b16 %v430
        %v820 = vunpack.c.l.b16 %v431
        %v821 = vunpack.c.l.b16 %v432
        %v822 = vunpack.c.h.b16 %v432
        %v823 = vunpack.c.l.b16 %v433
        %v824 = vunpack.c.h.b16 %v433
        %v825 = vunpack.c.l.b16 %v434
        %v826 = vunpack.c.l.b16 %v435
        %v827 = vunpack.c.h.b16 %v435
        %v828 = vunpack.c.l.b16 %v436
        %v829 = vunpack.c.h.b16 %v436
        %v830 = vunpack.c.l.b16 %v437
        %v831 = vunpack.c.l.b16 %v438
        %v832 = vunpack.c.h.b16 %v438
        %v833 = vunpack.c.l.b16 %v439
        %v834 = vunpack.c.h.b16 %v439
        %v835 = vunpack.c.l.b16 %v440
        %v836 = vpack.c.b16 %v601, %v596
        %v837 = vpack.c.b16 %v602, %v597
        %v838 = vpack.c.b16 %v603, %v598
        %v839 = vpack.c.b16 %v604, %v599
        %v840 = vpack.c.b16 %v605, %v600
        %v841 = vpack.c.b16 %v611, %v606
        %v842 = vpack.c.b16 %v612, %v607
        %v843 = vpack.c.b16 %v613, %v608
        %v844 = vpack.c.b16 %v614, %v609
        %v845 = vpack.c.b16 %v615, %v610
        %v846 = vpack.c.b16 %v621, %v616
        %v847 = vpack.c.b16 %v622, %v617
        %v848 = vpack.c.b16 %v623, %v618
        %v849 = vpack.c.b16 %v624, %v619
        %v850 = vpack.c.b16 %v625, %v620
        %v851 = vpack.c.b16 %v631, %v626
        %v852 = vpack.c.b16 %v632, %v627
        %v853 = vpack.c.b16 %v633, %v628
        %v854 = vpack.c.b16 %v634, %v629
        %v855 = vpack.c.b16 %v635, %v630
        %v856 = vpack.c.b16 %v641, %v636
        %v857 = vpack.c.b16 %v642, %v637
        %v858 = vpack.c.b16 %v643, %v638
        %v859 = vpack.c.b16 %v644, %v639
        %v860 = vpack.c.b16 %v645, %v640
        %v861 = vpack.c.b16 %v651, %v646
        %v862 = vpack.c.b16 %v652, %v647
        %v863 = vpack.c.b16 %v653, %v648
        %v864 = vpack.c.b16 %v654, %v649
        %v865 = vpack.c.b16 %v655, %v650
        %v866 = vpack.c.b16 %v661, %v656
        %v867 = vpack.c.b16 %v662, %v657
        %v868 = vpack.c.b16 %v663, %v658
        %v869 = vpack.c.b16 %v664, %v659
        %v870 = vpack.c.b16 %v665, %v660
        %v871 = vpack.c.b16 %v671, %v666
        %v872 = vpack.c.b16 %v672, %v667
        %v873 = vpack.c.b16 %v673, %v668
        %v874 = vpack.c.b16 %v674, %v669
        %v875 = vpack.c.b16 %v675, %v670
        %v876 = vpack.c.b16 %v681, %v676
        %v877 = vpack.c.b16 %v682, %v677
        %v878 = vpack.c.b16 %v683, %v678
        %v879 = vpack.c.b16 %v684, %v679
        %v880 = vpack.c.b16 %v685, %v680
        %v881 = vpack.c.b16 %v691, %v686
        %v882 = vpack.c.b16 %v692, %v687
        %v883 = vpack.c.b16 %v693, %v688
        %v884 = vpack.c.b16 %v694, %v689
        %v885 = vpack.c.b16 %v695, %v690
        %v886 = vpack.c.b16 %v701, %v696
        %v887 = vpack.c.b16 %v702, %v697
        %v888 = vpack.c.b16 %v703, %v698
        %v889 = vpack.c.b16 %v704, %v699
        %v890 = vpack.c.b16 %v705, %v700
        %v891 = vpack.c.b16 %v711, %v706
        %v892 = vpack.c.b16 %v712, %v707
        %v893 = vpack.c.b16 %v713, %v708
        %v894 = vpack.c.b16 %v714, %v709
        %v895 = vpack.c.b16 %v715, %v710
        %v896 = vpack.c.b16 %v721, %v716
        %v897 = vpack.c.b16 %v722, %v717
        %v898 = vpack.c.b16 %v723, %v718
        %v899 = vpack.c.b16 %v724, %v719
        %v900 = vpack.c.b16 %v725, %v720
        %v901 = vpack.c.b16 %v731, %v726
        %v902 = vpack.c.b16 %v732, %v727
        %v903 = vpack.c.b16 %v733, %v728
        %v904 = vpack.c.b16 %v734, %v729
        %v905 = vpack.c.b16 %v735, %v730
        %v906 = vpack.c.b16 %v741, %v736
        %v907 = vpack.c.b16 %v742, %v737
        %v908 = vpack.c.b16 %v743, %v738
        %v909 = vpack.c.b16 %v744, %v739
        %v910 = vpack.c.b16 %v745, %v740
        %v911 = vpack.c.b16 %v751, %v746
        %v912 = vpack.c.b16 %v752, %v747
        %v913 = vpack.c.b16 %v753, %v748
        %v914 = vpack.c.b16 %v754, %v749
        %v915 = vpack.c.b16 %v755, %v750
        %v916 = vpack.c.b16 %v761, %v756
        %v917 = vpack.c.b16 %v762, %v757
        %v918 = vpack.c.b16 %v763, %v758
        %v919 = vpack.c.b16 %v764, %v759
        %v920 = vpack.c.b16 %v765, %v760
        %v921 = vpack.c.b16 %v771, %v766
        %v922 = vpack.c.b16 %v772, %v767
        %v923 = vpack.c.b16 %v773, %v768
        %v924 = vpack.c.b16 %v774, %v769
        %v925 = vpack.c.b16 %v775, %v770
        %v926 = vpack.c.b16 %v781, %v776
        %v927 = vpack.c.b16 %v782, %v777
        %v928 = vpack.c.b16 %v783, %v778
        %v929 = vpack.c.b16 %v784, %v779
        %v930 = vpack.c.b16 %v785, %v780
        %v931 = vpack.c.b16 %v791, %v786
        %v932 = vpack.c.b16 %v792, %v787
        %v933 = vpack.c.b16 %v793, %v788
        %v934 = vpack.c.b16 %v794, %v789
        %v935 = vpack.c.b16 %v795, %v790
        %v936 = vpack.c.b16 %v801, %v796
        %v937 = vpack.c.b16 %v802, %v797
        %v938 = vpack.c.b16 %v803, %v798
        %v939 = vpack.c.b16 %v804, %v799
        %v940 = vpack.c.b16 %v805, %v800
        %v941 = vpack.c.b16 %v811, %v806
        %v942 = vpack.c.b16 %v812, %v807
        %v943 = vpack.c.b16 %v813, %v808
        %v944 = vpack.c.b16 %v814, %v809
        %v945 = vpack.c.b16 %v815, %v810
        %v946 = vpack.c.b16 %v821, %v816
        %v947 = vpack.c.b16 %v822, %v817
        %v948 = vpack.c.b16 %v823, %v818
        %v949 = vpack.c.b16 %v824, %v819
        %v950 = vpack.c.b16 %v825, %v820
        %v951 = vpack.c.b16 %v831, %v826
        %v952 = vpack.c.b16 %v832, %v827
        %v953 = vpack.c.b16 %v833, %v828
        %v954 = vpack.c.b16 %v834, %v829
        %v955 = vpack.c.b16 %v835, %v830
        %1076 = vmatprep.subr.bf16.mxu0 %v837
        %1077 = vmatpush1.bf16.msra.mxu0 %v836
        %1078 = vmatprep.subr.bf16.mxu0 %v842
        %1079 = vmatpush1.bf16.msra.mxu0 %v841
        %1080 = vmatprep.subr.bf16.mxu0 %v847
        %1081 = vmatpush1.bf16.msra.mxu0 %v846
        %1082 = vmatprep.subr.bf16.mxu0 %v852
        %1083 = vmatpush1.bf16.msra.mxu0 %v851
        %1084 = vmatprep.subr.bf16.mxu0 %v857
        %1085 = vmatpush1.bf16.msra.mxu0 %v856
        %1086 = vmatprep.subr.bf16.mxu0 %v862
        %1087 = vmatpush1.bf16.msra.mxu0 %v861
        %1088 = vmatprep.subr.bf16.mxu0 %v867
        %1089 = vmatpush1.bf16.msra.mxu0 %v866
        %1090 = vmatprep.subr.bf16.mxu0 %v872
        %1091 = vmatpush1.bf16.msra.mxu0 %v871
        %1092 = vmatprep.subr.bf16.mxu0 %v877
        %1093 = vmatpush1.bf16.msra.mxu0 %v876
        %1094 = vmatprep.subr.bf16.mxu0 %v882
        %1095 = vmatpush1.bf16.msra.mxu0 %v881
        %1096 = vmatprep.subr.bf16.mxu0 %v887
        %1097 = vmatpush1.bf16.msra.mxu0 %v886
        %1098 = vmatprep.subr.bf16.mxu0 %v892
        %1099 = vmatpush1.bf16.msra.mxu0 %v891
        %1100 = vmatprep.subr.bf16.mxu0 %v897
        %1101 = vmatpush1.bf16.msra.mxu0 %v896
        %1102 = vmatprep.subr.bf16.mxu0 %v902
        %1103 = vmatpush1.bf16.msra.mxu0 %v901
        %1104 = vmatprep.subr.bf16.mxu0 %v907
        %1105 = vmatpush1.bf16.msra.mxu0 %v906
        %1106 = vmatprep.subr.bf16.mxu0 %v912
        %1107 = vmatpush1.bf16.msra.mxu0 %v911
        %1108 = vmatprep.mubr.bf16.mxu0 %v447
        %1109 = vmatmul.mubr.bf16.gmra.mrb[0].mxu0 %v446
        %v1110 = vpop.f32.mrb[0].mxu0
        %v1111 = vadd.f32 0.0, %v1110
        %v1112 = vpop.f32.mrb[0].mxu0
        %v1113 = vadd.f32 0.0, %v1112
        %v1114 = vpop.f32.mrb[0].mxu0
        %v1115 = vpop.f32.mrb[0].mxu0
        %1116 = vdwg.mxu0
        %1117 = vmatprep.subr.bf16.mxu0 %v917
        %1118 = vmatpush1.bf16.msra.mxu0 %v916
        %1119 = vmatprep.subr.bf16.mxu0 %v922
        %1120 = vmatpush1.bf16.msra.mxu0 %v921
        %1121 = vmatprep.subr.bf16.mxu0 %v927
        %1122 = vmatpush1.bf16.msra.mxu0 %v926
        %1123 = vmatprep.subr.bf16.mxu0 %v932
        %1124 = vmatpush1.bf16.msra.mxu0 %v931
        %1125 = vmatprep.subr.bf16.mxu0 %v937
        %1126 = vmatpush1.bf16.msra.mxu0 %v936
        %1127 = vmatprep.subr.bf16.mxu0 %v942
        %1128 = vmatpush1.bf16.msra.mxu0 %v941
        %1129 = vmatprep.subr.bf16.mxu0 %v947
        %1130 = vmatpush1.bf16.msra.mxu0 %v946
        %1131 = vmatprep.subr.bf16.mxu0 %v952
        %1132 = vmatpush1.bf16.msra.mxu0 %v951
        %1133 = vmatprep.subr.bf16.mxu0 0
        %1134 = vmatpush1.bf16.msra.mxu0 0
        %1135 = vmatprep.subr.bf16.mxu0 0
        %1136 = vmatpush1.bf16.msra.mxu0 0
        %1137 = vmatprep.subr.bf16.mxu0 0
        %1138 = vmatpush1.bf16.msra.mxu0 0
        %1139 = vmatprep.subr.bf16.mxu0 0
        %1140 = vmatpush1.bf16.msra.mxu0 0
        %1141 = vmatprep.subr.bf16.mxu0 0
        %1142 = vmatpush1.bf16.msra.mxu0 0
        %1143 = vmatprep.subr.bf16.mxu0 0
        %1144 = vmatpush1.bf16.msra.mxu0 0
        %1145 = vmatprep.subr.bf16.mxu0 0
        %1146 = vmatpush1.bf16.msra.mxu0 0
        %1147 = vmatprep.subr.bf16.mxu0 0
        %1148 = vmatpush1.bf16.msra.mxu0 0
        %1149 = vmatprep.mubr.bf16.mxu0 0
        %1150 = vmatmul.mubr.bf16.gmra.mrb[0].mxu0 %v448
        %v1151 = vpop.f32.mrb[0].mxu0
        %v1152 = vadd.f32 %v1111, %v1151
        %v1153 = vpop.f32.mrb[0].mxu0
        %v1154 = vadd.f32 %v1113, %v1153
        %v1155 = vpop.f32.mrb[0].mxu0
        %v1156 = vpop.f32.mrb[0].mxu0
        %1157 = vdwg.mxu0
        %1158 = vmatprep.subr.bf16.mxu0 %v839
        %1159 = vmatpush1.bf16.msra.mxu0 %v838
        %1160 = vmatprep.subr.bf16.mxu0 %v844
        %1161 = vmatpush1.bf16.msra.mxu0 %v843
        %1162 = vmatprep.subr.bf16.mxu0 %v849
        %1163 = vmatpush1.bf16.msra.mxu0 %v848
        %1164 = vmatprep.subr.bf16.mxu0 %v854
        %1165 = vmatpush1.bf16.msra.mxu0 %v853
        %1166 = vmatprep.subr.bf16.mxu0 %v859
        %1167 = vmatpush1.bf16.msra.mxu0 %v858
        %1168 = vmatprep.subr.bf16.mxu0 %v864
        %1169 = vmatpush1.bf16.msra.mxu0 %v863
        %1170 = vmatprep.subr.bf16.mxu0 %v869
        %1171 = vmatpush1.bf16.msra.mxu0 %v868
        %1172 = vmatprep.subr.bf16.mxu0 %v874
        %1173 = vmatpush1.bf16.msra.mxu0 %v873
        %1174 = vmatprep.subr.bf16.mxu0 %v879
        %1175 = vmatpush1.bf16.msra.mxu0 %v878
        %1176 = vmatprep.subr.bf16.mxu0 %v884
        %1177 = vmatpush1.bf16.msra.mxu0 %v883
        %1178 = vmatprep.subr.bf16.mxu0 %v889
        %1179 = vmatpush1.bf16.msra.mxu0 %v888
        %1180 = vmatprep.subr.bf16.mxu0 %v894
        %1181 = vmatpush1.bf16.msra.mxu0 %v893
        %1182 = vmatprep.subr.bf16.mxu0 %v899
        %1183 = vmatpush1.bf16.msra.mxu0 %v898
        %1184 = vmatprep.subr.bf16.mxu0 %v904
        %1185 = vmatpush1.bf16.msra.mxu0 %v903
        %1186 = vmatprep.subr.bf16.mxu0 %v909
        %1187 = vmatpush1.bf16.msra.mxu0 %v908
        %1188 = vmatprep.subr.bf16.mxu0 %v914
        %1189 = vmatpush1.bf16.msra.mxu0 %v913
        %1190 = vmatprep.mubr.bf16.mxu0 %v447
        %1191 = vmatmul.mubr.bf16.gmra.mrb[0].mxu0 %v446
        %v1192 = vpop.f32.mrb[0].mxu0
        %v1193 = vadd.f32 0.0, %v1192
        %v1194 = vpop.f32.mrb[0].mxu0
        %v1195 = vadd.f32 0.0, %v1194
        %v1196 = vpop.f32.mrb[0].mxu0
        %v1197 = vpop.f32.mrb[0].mxu0
        %1198 = vdwg.mxu0
        %1199 = vmatprep.subr.bf16.mxu0 %v919
        %1200 = vmatpush1.bf16.msra.mxu0 %v918
        %1201 = vmatprep.subr.bf16.mxu0 %v924
        %1202 = vmatpush1.bf16.msra.mxu0 %v923
        %1203 = vmatprep.subr.bf16.mxu0 %v929
        %1204 = vmatpush1.bf16.msra.mxu0 %v928
        %1205 = vmatprep.subr.bf16.mxu0 %v934
        %1206 = vmatpush1.bf16.msra.mxu0 %v933
        %1207 = vmatprep.subr.bf16.mxu0 %v939
        %1208 = vmatpush1.bf16.msra.mxu0 %v938
        %1209 = vmatprep.subr.bf16.mxu0 %v944
        %1210 = vmatpush1.bf16.msra.mxu0 %v943
        %1211 = vmatprep.subr.bf16.mxu0 %v949
        %1212 = vmatpush1.bf16.msra.mxu0 %v948
        %1213 = vmatprep.subr.bf16.mxu0 %v954
        %1214 = vmatpush1.bf16.msra.mxu0 %v953
        %1215 = vmatprep.subr.bf16.mxu0 0
        %1216 = vmatpush1.bf16.msra.mxu0 0
        %1217 = vmatprep.subr.bf16.mxu0 0
        %1218 = vmatpush1.bf16.msra.mxu0 0
        %1219 = vmatprep.subr.bf16.mxu0 0
        %1220 = vmatpush1.bf16.msra.mxu0 0
        %1221 = vmatprep.subr.bf16.mxu0 0
        %1222 = vmatpush1.bf16.msra.mxu0 0
        %1223 = vmatprep.subr.bf16.mxu0 0
        %1224 = vmatpush1.bf16.msra.mxu0 0
        %1225 = vmatprep.subr.bf16.mxu0 0
        %1226 = vmatpush1.bf16.msra.mxu0 0
        %1227 = vmatprep.subr.bf16.mxu0 0
        %1228 = vmatpush1.bf16.msra.mxu0 0
        %1229 = vmatprep.subr.bf16.mxu0 0
        %1230 = vmatpush1.bf16.msra.mxu0 0
        %1231 = vmatprep.mubr.bf16.mxu0 0
        %1232 = vmatmul.mubr.bf16.gmra.mrb[0].mxu0 %v448
        %v1233 = vpop.f32.mrb[0].mxu0
        %v1234 = vadd.f32 %v1193, %v1233
        %v1235 = vpop.f32.mrb[0].mxu0
        %v1236 = vadd.f32 %v1195, %v1235
        %v1237 = vpop.f32.mrb[0].mxu0
        %v1238 = vpop.f32.mrb[0].mxu0
        %1239 = vdwg.mxu0
        %1240 = vmatprep.subr.bf16.mxu0 0
        %1241 = vmatpush1.bf16.msra.mxu0 %v840
        %1242 = vmatprep.subr.bf16.mxu0 0
        %1243 = vmatpush1.bf16.msra.mxu0 %v845
        %1244 = vmatprep.subr.bf16.mxu0 0
        %1245 = vmatpush1.bf16.msra.mxu0 %v850
        %1246 = vmatprep.subr.bf16.mxu0 0
        %1247 = vmatpush1.bf16.msra.mxu0 %v855
        %1248 = vmatprep.subr.bf16.mxu0 0
        %1249 = vmatpush1.bf16.msra.mxu0 %v860
        %1250 = vmatprep.subr.bf16.mxu0 0
        %1251 = vmatpush1.bf16.msra.mxu0 %v865
        %1252 = vmatprep.subr.bf16.mxu0 0
        %1253 = vmatpush1.bf16.msra.mxu0 %v870
        %1254 = vmatprep.subr.bf16.mxu0 0
        %1255 = vmatpush1.bf16.msra.mxu0 %v875
        %1256 = vmatprep.subr.bf16.mxu0 0
        %1257 = vmatpush1.bf16.msra.mxu0 %v880
        %1258 = vmatprep.subr.bf16.mxu0 0
        %1259 = vmatpush1.bf16.msra.mxu0 %v885
        %1260 = vmatprep.subr.bf16.mxu0 0
        %1261 = vmatpush1.bf16.msra.mxu0 %v890
        %1262 = vmatprep.subr.bf16.mxu0 0
        %1263 = vmatpush1.bf16.msra.mxu0 %v895
        %1264 = vmatprep.subr.bf16.mxu0 0
        %1265 = vmatpush1.bf16.msra.mxu0 %v900
        %1266 = vmatprep.subr.bf16.mxu0 0
        %1267 = vmatpush1.bf16.msra.mxu0 %v905
        %1268 = vmatprep.subr.bf16.mxu0 0
        %1269 = vmatpush1.bf16.msra.mxu0 %v910
        %1270 = vmatprep.subr.bf16.mxu0 0
        %1271 = vmatpush1.bf16.msra.mxu0 %v915
        %1272 = vmatprep.mubr.bf16.mxu0 %v447
        %1273 = vmatmul.mubr.bf16.gmra.mrb[0].mxu0 %v446
        %v1274 = vpop.f32.mrb[0].mxu0
        %v1275 = vadd.f32 0.0, %v1274
        %v1276 = vpop.f32.mrb[0].mxu0
        %v1277 = vpop.f32.mrb[0].mxu0
        %v1278 = vpop.f32.mrb[0].mxu0
        %1279 = vdwg.mxu0
        %1280 = vmatprep.subr.bf16.mxu0 0
        %1281 = vmatpush1.bf16.msra.mxu0 %v920
        %1282 = vmatprep.subr.bf16.mxu0 0
        %1283 = vmatpush1.bf16.msra.mxu0 %v925
        %1284 = vmatprep.subr.bf16.mxu0 0
        %1285 = vmatpush1.bf16.msra.mxu0 %v930
        %1286 = vmatprep.subr.bf16.mxu0 0
        %1287 = vmatpush1.bf16.msra.mxu0 %v935
        %1288 = vmatprep.subr.bf16.mxu0 0
        %1289 = vmatpush1.bf16.msra.mxu0 %v940
        %1290 = vmatprep.subr.bf16.mxu0 0
        %1291 = vmatpush1.bf16.msra.mxu0 %v945
        %1292 = vmatprep.subr.bf16.mxu0 0
        %1293 = vmatpush1.bf16.msra.mxu0 %v950
        %1294 = vmatprep.subr.bf16.mxu0 0
        %1295 = vmatpush1.bf16.msra.mxu0 %v955
        %1296 = vmatprep.subr.bf16.mxu0 0
        %1297 = vmatpush1.bf16.msra.mxu0 0
        %1298 = vmatprep.subr.bf16.mxu0 0
        %1299 = vmatpush1.bf16.msra.mxu0 0
        %1300 = vmatprep.subr.bf16.mxu0 0
        %1301 = vmatpush1.bf16.msra.mxu0 0
        %1302 = vmatprep.subr.bf16.mxu0 0
        %1303 = vmatpush1.bf16.msra.mxu0 0
        %1304 = vmatprep.subr.bf16.mxu0 0
        %1305 = vmatpush1.bf16.msra.mxu0 0
        %1306 = vmatprep.subr.bf16.mxu0 0
        %1307 = vmatpush1.bf16.msra.mxu0 0
        %1308 = vmatprep.subr.bf16.mxu0 0
        %1309 = vmatpush1.bf16.msra.mxu0 0
        %1310 = vmatprep.subr.bf16.mxu0 0
        %1311 = vmatpush1.bf16.msra.mxu0 0
        %1312 = vmatprep.mubr.bf16.mxu0 0
        %1313 = vmatmul.mubr.bf16.gmra.mrb[0].mxu0 %v448
        %v1314 = vpop.f32.mrb[0].mxu0
        %v1315 = vadd.f32 %v1275, %v1314
        %v1316 = vpop.f32.mrb[0].mxu0
        %v1317 = vpop.f32.mrb[0].mxu0
        %v1318 = vpop.f32.mrb[0].mxu0
        %1319 = vdwg.mxu0
        %v1320 = vadd.f32 %v290, %v1152
        %v1321 = vadd.f32 %v291, %v1154
        %v1322 = vadd.f32 %v292, %v1234
        %v1323 = vadd.f32 %v293, %v1236
        %v1324 = vadd.f32 %v294, %v1315
        %1325 = vst [vmem:[#allocation2] sm:$0xff] %v1320
        %1326 = vst [vmem:[#allocation2 + $0x8] sm:$0xff] %v1321
        %1327 = vst [vmem:[#allocation2 + $0x10] sm:$0xff] %v1322
        %1328 = vst [vmem:[#allocation2 + $0x18] sm:$0xff] %v1323
        %1329 = vst [vmem:[#allocation2 + $0x20] sm:$0xff] %v1324
        // Predicated region
        $region49: #{tpu_custom_call.1} parent=31 // pred_check
          %p1330 = pneg %p281
        $region50: #{tpu_custom_call.1} parent=31 // pred_check_branch
          %1332 = sbr.rel (%p1330) target = $region52
        $region51: #{tpu_custom_call.1} parent=31 // pred_region
          %v1333 = vld [vmem:[#allocation2] sm:$0xff]
          %v1334 = vld [vmem:[#allocation2 + $0x8] sm:$0xff]
          %v1335 = vld [vmem:[#allocation2 + $0x10] sm:$0xff]
          %v1336 = vld [vmem:[#allocation2 + $0x18] sm:$0xff]
          %v1337 = vld [vmem:[#allocation2 + $0x20] sm:$0xff]
          %v1338 = vld [vmem:[%s247] sm:$0x1f]
          %v1340 = vlaneseq
          %v1341 = vshrl.u32 %v1340, 7
          %v1342 = vsub.s32 0, %v1341
          %v1343 = vrot.slane %v1338, %v1342
          %v1344 = vlaneseq
          %v1345 = vshrl.u32 %v1344, 7
          %v1346 = vsub.s32 1, %v1345
          %v1347 = vrot.slane %v1338, %v1346
          %v1348 = vlaneseq
          %v1349 = vshrl.u32 %v1348, 7
          %v1350 = vsub.s32 2, %v1349
          %v1351 = vrot.slane %v1338, %v1350
          %v1352 = vlaneseq
          %v1353 = vshrl.u32 %v1352, 7
          %v1354 = vsub.s32 3, %v1353
          %v1355 = vrot.slane %v1338, %v1354
          %v1356 = vlaneseq
          %v1357 = vshrl.u32 %v1356, 7
          %v1358 = vsub.s32 4, %v1357
          %v1359 = vrot.slane %v1338, %v1358
          %v1365 = vadd.f32 %v1333, %v1343
          %v1366 = vadd.f32 %v1334, %v1347
          %v1367 = vadd.f32 %v1335, %v1351
          %v1368 = vadd.f32 %v1336, %v1355
          %v1369 = vadd.f32 %v1337, %v1359
          %v1370 = vxor.u32 %v1365, 2147483648
          %v1371 = vxor.u32 %v1366, 2147483648
          %v1372 = vxor.u32 %v1367, 2147483648
          %v1373 = vxor.u32 %v1368, 2147483648
          %v1374 = vxor.u32 %v1369, 2147483648
          %v1375 = vmul.f32 %v1370, 1.442695
          %v1376 = vpow.pop %v1375
          %v1377 = vmul.f32 %v1371, 1.442695
          %v1378 = vpow.pop %v1377
          %v1379 = vmul.f32 %v1372, 1.442695
          %v1380 = vpow.pop %v1379
          %v1381 = vmul.f32 %v1373, 1.442695
          %v1382 = vpow.pop %v1381
          %v1383 = vmul.f32 %v1374, 1.442695
          %v1384 = vpow.pop %v1383
          %v1385 = vadd.f32 %v1376, 1.0
          %v1386 = vadd.f32 %v1378, 1.0
          %v1387 = vadd.f32 %v1380, 1.0
          %v1388 = vadd.f32 %v1382, 1.0
          %v1389 = vadd.f32 %v1384, 1.0
          %v1390 = vrcp.pop %v1385
          %v1391 = vmul.f32 1.0, %v1390
          %v1392 = vrcp.pop %v1386
          %v1393 = vmul.f32 1.0, %v1392
          %v1394 = vrcp.pop %v1387
          %v1395 = vmul.f32 1.0, %v1394
          %v1396 = vrcp.pop %v1388
          %v1397 = vmul.f32 1.0, %v1396
          %v1398 = vrcp.pop %v1389
          %v1399 = vmul.f32 1.0, %v1398
          %v1400 = vmul.f32 %v1365, %v1391
          %v1401 = vmul.f32 %v1366, %v1393
          %v1402 = vmul.f32 %v1367, %v1395
          %v1403 = vmul.f32 %v1368, %v1397
          %v1404 = vmul.f32 %v1369, %v1399
          %v1405 = vpack.c.bf16 %v1400, %v1400
          %v1406 = vpack.c.bf16 %v1401, %v1401
          %v1407 = vpack.c.bf16 %v1402, %v1402
          %v1408 = vpack.c.bf16 %v1403, %v1403
          %v1409 = vpack.c.bf16 %v1404, %v1404
          %v1415 = vunpack.c.l.b16 %v1405
          %v1416 = vunpack.c.l.b16 %v1406
          %v1417 = vunpack.c.l.b16 %v1407
          %v1418 = vunpack.c.l.b16 %v1408
          %v1419 = vunpack.c.l.b16 %v1409
          %v1420 = vpack.c.b16 %v1416, %v1415
          %v1421 = vpack.c.b16 %v1418, %v1417
          %v1422 = vpack.c.b16 %v1419, %v1419
          %1426 = vst [vmem:[%s274] sm:$0xff] %v1420
          %1427 = vst [vmem:[%s274 + $0x8] sm:$0xff] %v1421
          %1428 = vst [vmem:[%s274 + $0x10] sm:$0xf] %v1422
        $region52: #{tpu_custom_call.1} parent=31 // pred_fallthru
          _
        %s1429 = sand.u32 %s132, 1
        %s1430 = scalar_lea.sflag [#allocation5], %s1429
        %s1431 = sand.u32 %s132, 1
        %s1432 = smul.addr %s1431, 20
        %s1433 = scalar_lea.vmem [#allocation9], %s1432
        // Predicated region
        $region53: #{tpu_custom_call.1} parent=31 // pred_check
          %p1434 = pneg %p142
        $region54: #{tpu_custom_call.1} parent=31 // pred_check_branch
          %1436 = sbr.rel (%p1434) target = $region56
        $region55: #{tpu_custom_call.1} parent=31 // pred_region
          %s1437 = smul.u32 5, %s27
          %s1439 = ssub.s32 320, 320
          %1440 = vsyncadd %s1430, %s1439
          %s1441 = smul.addr %s26, 10
          %s1442 = sadd.s32 %s1437, %s1441
          %s1443 = smul.addr %s1442, 64
          %s1444 = scalar_lea.hbm %s3, %s1443
          %s1446 = sshll.u32 %s1433, 4
          %s1447 = int_to_ptr.vmem [resolvable:$true] %s1446
          %1449 = dma.vmem_to_hbm [thread:$0]  %s1447, 320, %s1444, %s1430
        $region56: #{tpu_custom_call.1} parent=31 // pred_fallthru
          _
      $region32: #{tpu_custom_call.1} parent=5 // pred_fallthru
        _
      %p1450 = scmp.le.s32.totalorder 2, %s16
      // Predicated region
      $region57: #{tpu_custom_call.1} parent=5 // pred_check
        %p1451 = pneg %p1450
      $region58: #{tpu_custom_call.1} parent=5 // pred_check_branch
        %1453 = sbr.rel (%p1451) target = $region60
      $region59: #{tpu_custom_call.1} parent=5 // pred_region
        %s1454 = ssub.s32 %s16, 2
        // Predicated region
        $region61: #{tpu_custom_call.1} parent=59 // pred_check
          %p1455 = pneg %p148
        $region62: #{tpu_custom_call.1} parent=59 // pred_check_branch
          %1457 = sbr.rel (%p1455) target = $region64
        $region63: #{tpu_custom_call.1} parent=59 // pred_region
          %s1458 = sand.u32 %s133, 1
          %s1459 = scalar_lea.sflag [#allocation5], %s1458
          %s1460 = sand.u32 %s133, 1
          %s1461 = smul.addr %s1460, 20
          %s1462 = scalar_lea.vmem [#allocation9], %s1461
          %1463 = dma.done %s1459, 320
        $region64: #{tpu_custom_call.1} parent=59 // pred_fallthru
          _
      $region60: #{tpu_custom_call.1} parent=5 // pred_fallthru
        _
    $region6: #{tpu_custom_call.1} parent=1 // loop_footer
      %s20 = sadd.s32 1, %s16
    $region7: #{tpu_custom_call.1} parent=1 // loop_footer_branch
      %15 = sbr.rel target = $region3
    $region8: #{tpu_custom_call.1} parent=1 // loop_exit
      _
    %1464 = vsyncpa [#allocation4], 1
    %s1465 = scalar_lea.sflag [#allocation4], 1
    %1466 = vsyncpa %s1465, 1
    %1467 = vsyncpa [#allocation7], 1
    %s1468 = scalar_lea.sflag [#allocation7], 1
    %1469 = vsyncpa %s1468, 1
    %1470 = vsyncpa [#allocation5], 1
    %s1471 = scalar_lea.sflag [#allocation5], 1
    %1472 = vsyncpa %s1471, 1

</llo_original>
